<compile_context>
chip_gen: v7x
topology: tpu7x:2x2x1
jax: 0.10.0
libtpu: 0.0.40
codegen_flags: <defaults>
</compile_context>

<pallas_src>
import jax
import jax.numpy as jnp
from jax.experimental import pallas as pl
from jax.experimental.pallas import tpu as pltpu


# Original (PyTorch) layer dims.
LAYER_DIMS = [(28 * 28, 400), (400, 200), (200, 200), (200, 200), (200, 100), (100, 10)]
LANE = 128
SUBLANE = 16  # bf16 sublane packing; keep batch tiles a multiple of this.


def _round_up(n, m):
    return ((n + m - 1) // m) * m


# Lane-padded dims (multiples of 128): 896 -> 512 -> 256 -> 256 -> 256 -> 128 -> 128
PADDED_DIMS = [(_round_up(i, LANE), _round_up(o, LANE)) for i, o in LAYER_DIMS]
IN_FEATS = 28 * 28
IN_PAD = PADDED_DIMS[0][0]      # 896
OUT_PAD = PADDED_DIMS[-1][1]    # 128


def mlp_kernel(x_ref,
               w1_ref, b1_ref, w2_ref, b2_ref, w3_ref, b3_ref,
               w4_ref, b4_ref, w5_ref, b5_ref, w6_ref, b6_ref,
               out_ref):
    """One batch tile through the whole 6-layer MLP.

    Everything streamed is bf16; the MXU accumulates in f32 and the result is
    rounded back to bf16 for the (cheap) bias-add / ReLU epilogue so the VPU
    work and vreg pressure stay low.
    """

    def layer(h, w_ref, b_ref):
        acc = jnp.dot(h, w_ref[...], preferred_element_type=jnp.float32)
        return acc.astype(jnp.bfloat16) + b_ref[...]

    h = x_ref[...]                                   # (TB, 896) bf16
    h = jnp.maximum(layer(h, w1_ref, b1_ref), 0)
    h = jnp.maximum(layer(h, w2_ref, b2_ref), 0)
    h = jnp.maximum(layer(h, w3_ref, b3_ref), 0)
    h = jnp.maximum(layer(h, w4_ref, b4_ref), 0)
    h = jnp.maximum(layer(h, w5_ref, b5_ref), 0)
    out_ref[...] = layer(h, w6_ref, b6_ref)          # (TB, 128) bf16, cols 10..127 zero


def init_params(key):
    """PyTorch-Linear-style init: U(-1/sqrt(fan_in), 1/sqrt(fan_in)); W as (in, out)."""
    params = []
    for (fan_in, fan_out) in LAYER_DIMS:
        key, kw, kb = jax.random.split(key, 3)
        bound = 1.0 / jnp.sqrt(jnp.float32(fan_in))
        w = jax.random.uniform(kw, (fan_in, fan_out), jnp.float32, -bound, bound)
        b = jax.random.uniform(kb, (fan_out,), jnp.float32, -bound, bound)
        params.append((w, b))
    return params


def prepare_params(params):
    """Zero-pad every layer to 128-lane multiples; weights and biases in bf16."""
    prepared = []
    for (w, b), (pin, pout) in zip(params, PADDED_DIMS):
        fin, fout = w.shape
        wp = jnp.zeros((pin, pout), jnp.bfloat16).at[:fin, :fout].set(w.astype(jnp.bfloat16))
        bp = jnp.zeros((1, pout), jnp.bfloat16).at[0, :fout].set(b.astype(jnp.bfloat16))
        prepared.append((wp, bp))
    return prepared


def _choose_tiling(batch, batch_tile):
    """Pick (tile, num_tiles, padded_batch) minimizing padding, with >=2 tiles
    when B > 16 so the 'parallel' axis can use both TensorCores on v7x."""
    if batch <= 16:
        n_tiles = 1
    else:
        n_tiles = max(-(-batch // batch_tile), 2)
    tb = _round_up(-(-batch // n_tiles), SUBLANE)
    return tb, n_tiles, tb * n_tiles


def fnn_forward(x, prepared_params, *, batch_tile=512):
    """x: any shape with trailing dims multiplying to 784 (e.g. (B, 1, 28, 28))."""
    batch = x.reshape(-1, IN_FEATS).shape[0]
    tb, num_tiles, b_pad = _choose_tiling(batch, batch_tile)

    # Single fused cast+pad in bf16 (rows -> b_pad, lanes 784 -> 896).
    x2d = x.reshape(-1, IN_FEATS).astype(jnp.bfloat16)
    x_pad = jnp.pad(x2d, ((0, b_pad - batch), (0, IN_PAD - IN_FEATS)))

    flat_params = []
    for (w, b) in prepared_params:
        flat_params.extend([w, b])

    in_specs = [pl.BlockSpec((tb, IN_PAD), lambda i: (i, 0))]
    # Constant index map -> each weight/bias block is fetched once and stays resident.
    for arr in flat_params:
        in_specs.append(pl.BlockSpec(arr.shape, lambda i: (0, 0)))

    flops = 2 * b_pad * sum(pi * po for (pi, po) in PADDED_DIMS)
    bytes_accessed = (x_pad.size * x_pad.dtype.itemsize
                      + b_pad * OUT_PAD * 2
                      + sum(a.size * a.dtype.itemsize for a in flat_params))

    out = pl.pallas_call(
        mlp_kernel,
        out_shape=jax.ShapeDtypeStruct((b_pad, OUT_PAD), jnp.bfloat16),
        grid=(num_tiles,),
        in_specs=in_specs,
        out_specs=pl.BlockSpec((tb, OUT_PAD), lambda i: (i, 0)),
        compiler_params=pltpu.CompilerParams(
            dimension_semantics=("parallel",)),
        cost_estimate=pl.CostEstimate(
            flops=flops, transcendentals=0, bytes_accessed=bytes_accessed),
    )(x_pad, *flat_params)

    return out[:batch, :10].astype(jnp.float32)


def fnn_forward_ref(x, prepared_params):
    """Pure-JAX replica of the kernel math (bf16 streams, f32 MXU accumulation,
    bf16 bias-add / ReLU)."""
    h = x.reshape(-1, IN_FEATS).astype(jnp.bfloat16)
    h = jnp.pad(h, ((0, 0), (0, IN_PAD - IN_FEATS)))
    for i, (w, b) in enumerate(prepared_params):
        acc = jnp.dot(h, w, preferred_element_type=jnp.float32)
        h = acc.astype(jnp.bfloat16) + b
        if i < len(prepared_params) - 1:
            h = jnp.maximum(h, 0)
    return h[:, :10].astype(jnp.float32)


if __name__ == "__main__":
    key = jax.random.PRNGKey(0)
    key, kx = jax.random.split(key)

    params = init_params(key)
    prepared = prepare_params(params)

    # Small MNIST-like batch: (B, 1, 28, 28) NCHW, flattened to (B, 784) inside.
    x = jax.random.normal(kx, (8, 1, 28, 28), jnp.float32)

    out = jax.block_until_ready(fnn_forward(x, prepared))
    ref = fnn_forward_ref(x, prepared)

    assert out.shape == (8, 10), out.shape
    assert jnp.allclose(out, ref, atol=3e-2, rtol=3e-2), (
        f"mismatch vs reference, max abs diff = {jnp.max(jnp.abs(out - ref))}")

    print("KERNEL_OK")
</pallas_src>

<mosaic_0001>
module attributes {stable_mosaic.version = 11 : i64} {
  func.func @mlp_kernel(%arg0: i32, %arg1: memref<16x896xbf16, #tpu.memory_space<vmem>>, %arg2: memref<896x512xbf16, #tpu.memory_space<vmem>>, %arg3: memref<1x512xbf16, #tpu.memory_space<vmem>>, %arg4: memref<512x256xbf16, #tpu.memory_space<vmem>>, %arg5: memref<1x256xbf16, #tpu.memory_space<vmem>>, %arg6: memref<256x256xbf16, #tpu.memory_space<vmem>>, %arg7: memref<1x256xbf16, #tpu.memory_space<vmem>>, %arg8: memref<256x256xbf16, #tpu.memory_space<vmem>>, %arg9: memref<1x256xbf16, #tpu.memory_space<vmem>>, %arg10: memref<256x128xbf16, #tpu.memory_space<vmem>>, %arg11: memref<1x128xbf16, #tpu.memory_space<vmem>>, %arg12: memref<128x128xbf16, #tpu.memory_space<vmem>>, %arg13: memref<1x128xbf16, #tpu.memory_space<vmem>>, %arg14: memref<16x128xbf16, #tpu.memory_space<vmem>>) attributes {dimension_semantics = [#tpu.dimension_semantics<parallel>], iteration_bounds = array<i64: 1>, scalar_prefetch = 0 : i64, scratch_operands = 0 : i64, tpu.core_type = #tpu.core_type<tc>, window_params = [{transform_indices = @transform_0, window_bounds = array<i64: 16, 896>}, {pipeline_mode = #tpu.pipeline_mode<synchronous>, transform_indices = @transform_1, window_bounds = array<i64: 896, 512>}, {pipeline_mode = #tpu.pipeline_mode<synchronous>, transform_indices = @transform_2, window_bounds = array<i64: 1, 512>}, {pipeline_mode = #tpu.pipeline_mode<synchronous>, transform_indices = @transform_3, window_bounds = array<i64: 512, 256>}, {pipeline_mode = #tpu.pipeline_mode<synchronous>, transform_indices = @transform_4, window_bounds = array<i64: 1, 256>}, {pipeline_mode = #tpu.pipeline_mode<synchronous>, transform_indices = @transform_5, window_bounds = array<i64: 256, 256>}, {pipeline_mode = #tpu.pipeline_mode<synchronous>, transform_indices = @transform_6, window_bounds = array<i64: 1, 256>}, {pipeline_mode = #tpu.pipeline_mode<synchronous>, transform_indices = @transform_7, window_bounds = array<i64: 256, 256>}, {pipeline_mode = #tpu.pipeline_mode<synchronous>, transform_indices = @transform_8, window_bounds = array<i64: 1, 256>}, {pipeline_mode = #tpu.pipeline_mode<synchronous>, transform_indices = @transform_9, window_bounds = array<i64: 256, 128>}, {pipeline_mode = #tpu.pipeline_mode<synchronous>, transform_indices = @transform_10, window_bounds = array<i64: 1, 128>}, {pipeline_mode = #tpu.pipeline_mode<synchronous>, transform_indices = @transform_11, window_bounds = array<i64: 128, 128>}, {pipeline_mode = #tpu.pipeline_mode<synchronous>, transform_indices = @transform_12, window_bounds = array<i64: 1, 128>}, {transform_indices = @transform_13, window_bounds = array<i64: 16, 128>}]} {
    %c0 = arith.constant 0 : index
    %c0_0 = arith.constant 0 : index
    %0 = vector.load %arg1[%c0, %c0_0] : memref<16x896xbf16, #tpu.memory_space<vmem>>, vector<16x896xbf16>
    %c0_1 = arith.constant 0 : index
    %c0_2 = arith.constant 0 : index
    %1 = vector.load %arg2[%c0_1, %c0_2] : memref<896x512xbf16, #tpu.memory_space<vmem>>, vector<896x512xbf16>
    %cst = arith.constant dense<0.000000e+00> : vector<16x512xf32>
    %2 = tpu.matmul %0, %1, %cst {dimension_numbers = #tpu.dot_dimension_numbers<[1], [0], [0], [1], [0, 0, 1, 1], [], []>} : vector<16x896xbf16>, vector<896x512xbf16>, vector<16x512xf32> -> vector<16x512xf32>
    %3 = arith.truncf %2 : vector<16x512xf32> to vector<16x512xbf16>
    %c0_3 = arith.constant 0 : index
    %c0_4 = arith.constant 0 : index
    %4 = vector.load %arg3[%c0_3, %c0_4] : memref<1x512xbf16, #tpu.memory_space<vmem>>, vector<1x512xbf16>
    %5 = vector.broadcast %4 : vector<1x512xbf16> to vector<16x512xbf16>
    %6 = arith.addf %3, %5 : vector<16x512xbf16>
    %cst_5 = arith.constant 0.000000e+00 : bf16
    %7 = vector.broadcast %cst_5 : bf16 to vector<16x512xbf16>
    %8 = arith.maximumf %6, %7 : vector<16x512xbf16>
    %c0_6 = arith.constant 0 : index
    %c0_7 = arith.constant 0 : index
    %9 = vector.load %arg4[%c0_6, %c0_7] : memref<512x256xbf16, #tpu.memory_space<vmem>>, vector<512x256xbf16>
    %cst_8 = arith.constant dense<0.000000e+00> : vector<16x256xf32>
    %10 = tpu.matmul %8, %9, %cst_8 {dimension_numbers = #tpu.dot_dimension_numbers<[1], [0], [0], [1], [0, 0, 1, 1], [], []>} : vector<16x512xbf16>, vector<512x256xbf16>, vector<16x256xf32> -> vector<16x256xf32>
    %11 = arith.truncf %10 : vector<16x256xf32> to vector<16x256xbf16>
    %c0_9 = arith.constant 0 : index
    %c0_10 = arith.constant 0 : index
    %12 = vector.load %arg5[%c0_9, %c0_10] : memref<1x256xbf16, #tpu.memory_space<vmem>>, vector<1x256xbf16>
    %13 = vector.broadcast %12 : vector<1x256xbf16> to vector<16x256xbf16>
    %14 = arith.addf %11, %13 : vector<16x256xbf16>
    %cst_11 = arith.constant 0.000000e+00 : bf16
    %15 = vector.broadcast %cst_11 : bf16 to vector<16x256xbf16>
    %16 = arith.maximumf %14, %15 : vector<16x256xbf16>
    %c0_12 = arith.constant 0 : index
    %c0_13 = arith.constant 0 : index
    %17 = vector.load %arg6[%c0_12, %c0_13] : memref<256x256xbf16, #tpu.memory_space<vmem>>, vector<256x256xbf16>
    %cst_14 = arith.constant dense<0.000000e+00> : vector<16x256xf32>
    %18 = tpu.matmul %16, %17, %cst_14 {dimension_numbers = #tpu.dot_dimension_numbers<[1], [0], [0], [1], [0, 0, 1, 1], [], []>} : vector<16x256xbf16>, vector<256x256xbf16>, vector<16x256xf32> -> vector<16x256xf32>
    %19 = arith.truncf %18 : vector<16x256xf32> to vector<16x256xbf16>
    %c0_15 = arith.constant 0 : index
    %c0_16 = arith.constant 0 : index
    %20 = vector.load %arg7[%c0_15, %c0_16] : memref<1x256xbf16, #tpu.memory_space<vmem>>, vector<1x256xbf16>
    %21 = vector.broadcast %20 : vector<1x256xbf16> to vector<16x256xbf16>
    %22 = arith.addf %19, %21 : vector<16x256xbf16>
    %cst_17 = arith.constant 0.000000e+00 : bf16
    %23 = vector.broadcast %cst_17 : bf16 to vector<16x256xbf16>
    %24 = arith.maximumf %22, %23 : vector<16x256xbf16>
    %c0_18 = arith.constant 0 : index
    %c0_19 = arith.constant 0 : index
    %25 = vector.load %arg8[%c0_18, %c0_19] : memref<256x256xbf16, #tpu.memory_space<vmem>>, vector<256x256xbf16>
    %cst_20 = arith.constant dense<0.000000e+00> : vector<16x256xf32>
    %26 = tpu.matmul %24, %25, %cst_20 {dimension_numbers = #tpu.dot_dimension_numbers<[1], [0], [0], [1], [0, 0, 1, 1], [], []>} : vector<16x256xbf16>, vector<256x256xbf16>, vector<16x256xf32> -> vector<16x256xf32>
    %27 = arith.truncf %26 : vector<16x256xf32> to vector<16x256xbf16>
    %c0_21 = arith.constant 0 : index
    %c0_22 = arith.constant 0 : index
    %28 = vector.load %arg9[%c0_21, %c0_22] : memref<1x256xbf16, #tpu.memory_space<vmem>>, vector<1x256xbf16>
    %29 = vector.broadcast %28 : vector<1x256xbf16> to vector<16x256xbf16>
    %30 = arith.addf %27, %29 : vector<16x256xbf16>
    %cst_23 = arith.constant 0.000000e+00 : bf16
    %31 = vector.broadcast %cst_23 : bf16 to vector<16x256xbf16>
    %32 = arith.maximumf %30, %31 : vector<16x256xbf16>
    %c0_24 = arith.constant 0 : index
    %c0_25 = arith.constant 0 : index
    %33 = vector.load %arg10[%c0_24, %c0_25] : memref<256x128xbf16, #tpu.memory_space<vmem>>, vector<256x128xbf16>
    %cst_26 = arith.constant dense<0.000000e+00> : vector<16x128xf32>
    %34 = tpu.matmul %32, %33, %cst_26 {dimension_numbers = #tpu.dot_dimension_numbers<[1], [0], [0], [1], [0, 0, 1, 1], [], []>} : vector<16x256xbf16>, vector<256x128xbf16>, vector<16x128xf32> -> vector<16x128xf32>
    %35 = arith.truncf %34 : vector<16x128xf32> to vector<16x128xbf16>
    %c0_27 = arith.constant 0 : index
    %c0_28 = arith.constant 0 : index
    %36 = vector.load %arg11[%c0_27, %c0_28] : memref<1x128xbf16, #tpu.memory_space<vmem>>, vector<1x128xbf16>
    %37 = vector.broadcast %36 : vector<1x128xbf16> to vector<16x128xbf16>
    %38 = arith.addf %35, %37 : vector<16x128xbf16>
    %cst_29 = arith.constant 0.000000e+00 : bf16
    %39 = vector.broadcast %cst_29 : bf16 to vector<16x128xbf16>
    %40 = arith.maximumf %38, %39 : vector<16x128xbf16>
    %c0_30 = arith.constant 0 : index
    %c0_31 = arith.constant 0 : index
    %41 = vector.load %arg12[%c0_30, %c0_31] : memref<128x128xbf16, #tpu.memory_space<vmem>>, vector<128x128xbf16>
    %cst_32 = arith.constant dense<0.000000e+00> : vector<16x128xf32>
    %42 = tpu.matmul %40, %41, %cst_32 {dimension_numbers = #tpu.dot_dimension_numbers<[1], [0], [0], [1], [0, 0, 1, 1], [], []>} : vector<16x128xbf16>, vector<128x128xbf16>, vector<16x128xf32> -> vector<16x128xf32>
    %43 = arith.truncf %42 : vector<16x128xf32> to vector<16x128xbf16>
    %c0_33 = arith.constant 0 : index
    %c0_34 = arith.constant 0 : index
    %44 = vector.load %arg13[%c0_33, %c0_34] : memref<1x128xbf16, #tpu.memory_space<vmem>>, vector<1x128xbf16>
    %45 = vector.broadcast %44 : vector<1x128xbf16> to vector<16x128xbf16>
    %46 = arith.addf %43, %45 : vector<16x128xbf16>
    %c0_35 = arith.constant 0 : index
    %c0_36 = arith.constant 0 : index
    %47 = vector.load %arg14[%c0_35, %c0_36] : memref<16x128xbf16, #tpu.memory_space<vmem>>, vector<16x128xbf16>
    tpu.vector_store %arg14[%c0_35, %c0_36], %46 {strides = array<i32>} : memref<16x128xbf16, #tpu.memory_space<vmem>>, vector<16x128xbf16>,
    return
  }
  func.func @transform_0(%arg0: i32) -> (i32, i32) {
    %c0_i32 = arith.constant 0 : i32
    %c0_i32_0 = arith.constant 0 : i32
    return %arg0, %c0_i32 : i32, i32
  }
  func.func @transform_1(%arg0: i32) -> (i32, i32) {
    %c0_i32 = arith.constant 0 : i32
    %c0_i32_0 = arith.constant 0 : i32
    %c0_i32_1 = arith.constant 0 : i32
    return %c0_i32, %c0_i32_0 : i32, i32
  }
  func.func @transform_2(%arg0: i32) -> (i32, i32) {
    %c0_i32 = arith.constant 0 : i32
    %c0_i32_0 = arith.constant 0 : i32
    %c0_i32_1 = arith.constant 0 : i32
    return %c0_i32, %c0_i32_0 : i32, i32
  }
  func.func @transform_3(%arg0: i32) -> (i32, i32) {
    %c0_i32 = arith.constant 0 : i32
    %c0_i32_0 = arith.constant 0 : i32
    %c0_i32_1 = arith.constant 0 : i32
    return %c0_i32, %c0_i32_0 : i32, i32
  }
  func.func @transform_4(%arg0: i32) -> (i32, i32) {
    %c0_i32 = arith.constant 0 : i32
    %c0_i32_0 = arith.constant 0 : i32
    %c0_i32_1 = arith.constant 0 : i32
    return %c0_i32, %c0_i32_0 : i32, i32
  }
  func.func @transform_5(%arg0: i32) -> (i32, i32) {
    %c0_i32 = arith.constant 0 : i32
    %c0_i32_0 = arith.constant 0 : i32
    %c0_i32_1 = arith.constant 0 : i32
    return %c0_i32, %c0_i32_0 : i32, i32
  }
  func.func @transform_6(%arg0: i32) -> (i32, i32) {
    %c0_i32 = arith.constant 0 : i32
    %c0_i32_0 = arith.constant 0 : i32
    %c0_i32_1 = arith.constant 0 : i32
    return %c0_i32, %c0_i32_0 : i32, i32
  }
  func.func @transform_7(%arg0: i32) -> (i32, i32) {
    %c0_i32 = arith.constant 0 : i32
    %c0_i32_0 = arith.constant 0 : i32
    %c0_i32_1 = arith.constant 0 : i32
    return %c0_i32, %c0_i32_0 : i32, i32
  }
  func.func @transform_8(%arg0: i32) -> (i32, i32) {
    %c0_i32 = arith.constant 0 : i32
    %c0_i32_0 = arith.constant 0 : i32
    %c0_i32_1 = arith.constant 0 : i32
    return %c0_i32, %c0_i32_0 : i32, i32
  }
  func.func @transform_9(%arg0: i32) -> (i32, i32) {
    %c0_i32 = arith.constant 0 : i32
    %c0_i32_0 = arith.constant 0 : i32
    %c0_i32_1 = arith.constant 0 : i32
    return %c0_i32, %c0_i32_0 : i32, i32
  }
  func.func @transform_10(%arg0: i32) -> (i32, i32) {
    %c0_i32 = arith.constant 0 : i32
    %c0_i32_0 = arith.constant 0 : i32
    %c0_i32_1 = arith.constant 0 : i32
    return %c0_i32, %c0_i32_0 : i32, i32
  }
  func.func @transform_11(%arg0: i32) -> (i32, i32) {
    %c0_i32 = arith.constant 0 : i32
    %c0_i32_0 = arith.constant 0 : i32
    %c0_i32_1 = arith.constant 0 : i32
    return %c0_i32, %c0_i32_0 : i32, i32
  }
  func.func @transform_12(%arg0: i32) -> (i32, i32) {
    %c0_i32 = arith.constant 0 : i32
    %c0_i32_0 = arith.constant 0 : i32
    %c0_i32_1 = arith.constant 0 : i32
    return %c0_i32, %c0_i32_0 : i32, i32
  }
  func.func @transform_13(%arg0: i32) -> (i32, i32) {
    %c0_i32 = arith.constant 0 : i32
    %c0_i32_0 = arith.constant 0 : i32
    return %arg0, %c0_i32 : i32, i32
  }
}

</mosaic_0001>

<llo_original>
// kernel: tpu_custom_call.1
$region0: #{tpu_custom_call.1}
  #allocation0 [shape = 'u32[]', space=smem, size = 0x4, offset = 0x4, fixed_abs, tag = 'smem constant byte address 0x4 - core index']
  #allocation1 [shape = 'u32[144,128]{1,0:T(1,128)}', space=vmem, size = 0x12000, scoped, tag = 'internal scratch']
  %s0 = inlined_call_operand.hbm [shape: bf16[16,896], index: 0, kind: input, shape index: {}]
  %s1 = inlined_call_operand.hbm [shape: bf16[896,512], index: 1, kind: input, shape index: {}]
  %s2 = inlined_call_operand.vmem [shape: bf16[1,512], index: 2, kind: input, shape index: {}]
  %s3 = inlined_call_operand.hbm [shape: bf16[512,256], index: 3, kind: input, shape index: {}]
  %s4 = inlined_call_operand.vmem [shape: bf16[1,256], index: 4, kind: input, shape index: {}]
  %s5 = inlined_call_operand.hbm [shape: bf16[256,256], index: 5, kind: input, shape index: {}]
  %s6 = inlined_call_operand.vmem [shape: bf16[1,256], index: 6, kind: input, shape index: {}]
  %s7 = inlined_call_operand.hbm [shape: bf16[256,256], index: 7, kind: input, shape index: {}]
  %s8 = inlined_call_operand.vmem [shape: bf16[1,256], index: 8, kind: input, shape index: {}]
  %s9 = inlined_call_operand.hbm [shape: bf16[256,128], index: 9, kind: input, shape index: {}]
  %s10 = inlined_call_operand.vmem [shape: bf16[1,128], index: 10, kind: input, shape index: {}]
  %s11 = inlined_call_operand.hbm [shape: bf16[128,128], index: 11, kind: input, shape index: {}]
  %s12 = inlined_call_operand.vmem [shape: bf16[1,128], index: 12, kind: input, shape index: {}]
  %s13 = inlined_call_operand.hbm [shape: bf16[16,128], index: 13, kind: output, shape index: {}]
  %s14 = sld [smem:[#allocation0]]
  $region90: #{tpu_custom_call.1} parent=0
    _
  %s16 = ssub.s32 1, %s14
  %s17 = scalar_select 0, %s16, %s14
  $region1: #{tpu_custom_call.1} parent=0
    #allocation2 [shape = 'u8[28672]{0}', space=vmem, size = 0x7000, scoped, tag = 'input window, operand 0, single buffered']
    #allocation3 [shape = 's32[1]{0}', space=sflag, size = 0x4, scoped, tag = 'scoped memory for tpu_custom_call.1']
    #allocation4 [shape = 's32[1]{0}', space=sflag, size = 0x4, scoped, tag = 'scoped memory for tpu_custom_call.1']
    #allocation5 [shape = 'u8[917504]{0}', space=vmem, size = 0xe0000, scoped, tag = 'input window, operand 1, single buffered']
    #allocation6 [shape = 's32[1]{0}', space=sflag, size = 0x4, scoped, tag = 'scoped memory for tpu_custom_call.1']
    #allocation7 [shape = 'u8[262144]{0}', space=vmem, size = 0x40000, scoped, tag = 'input window, operand 3, single buffered']
    #allocation8 [shape = 'u8[131072]{0}', space=vmem, size = 0x20000, scoped, tag = 'input window, operand 5, single buffered']
    #allocation9 [shape = 's32[1]{0}', space=sflag, size = 0x4, scoped, tag = 'scoped memory for tpu_custom_call.1']
    #allocation10 [shape = 'u8[131072]{0}', space=vmem, size = 0x20000, scoped, tag = 'input window, operand 7, single buffered']
    #allocation11 [shape = 'u8[65536]{0}', space=vmem, size = 0x10000, scoped, tag = 'input window, operand 9, single buffered']
    #allocation12 [shape = 's32[1]{0}', space=sflag, size = 0x4, scoped, tag = 'scoped memory for tpu_custom_call.1']
    #allocation13 [shape = 'u8[32768]{0}', space=vmem, size = 0x8000, scoped, tag = 'input window, operand 11, single buffered']
    #allocation14 [shape = 'u8[4096]{0}', space=vmem, size = 0x1000, scoped, tag = 'output window, operand 0, single buffered']
    %18 = vsyncpa [#allocation3], 0
    %19 = vsyncpa [#allocation6], 0
    %20 = vsyncpa [#allocation9], 0
    %21 = vsyncpa [#allocation12], 0
    %22 = vsyncpa [#allocation4], 0
    // Predicated region
    $region2: #{tpu_custom_call.1} parent=1 // pred_check
      _
    $region3: #{tpu_custom_call.1} parent=1 // pred_check_branch
      %24 = sbr.rel (0) target = $region5
    $region4: #{tpu_custom_call.1} parent=1 // pred_region
      %s26 = ssub.s32 896, 896
      %27 = vsyncadd [#allocation3], %s26
      %s28 = sshll.u32 [#allocation2], 4
      %s29 = int_to_ptr.vmem [resolvable:$true] %s28
      %34 = dma.hbm_to_vmem [thread:$0]  %s0, 896, %s29, [#allocation3], 448, 448, 28
    $region5: #{tpu_custom_call.1} parent=1 // pred_fallthru
      _
    // Predicated region
    $region6: #{tpu_custom_call.1} parent=1 // pred_check
      _
    $region7: #{tpu_custom_call.1} parent=1 // pred_check_branch
      %36 = sbr.rel (0) target = $region9
    $region8: #{tpu_custom_call.1} parent=1 // pred_region
      %s38 = ssub.s32 28672, 28672
      %39 = vsyncadd [#allocation6], %s38
      %s40 = sshll.u32 [#allocation5], 4
      %s41 = int_to_ptr.vmem [resolvable:$true] %s40
      %46 = dma.hbm_to_vmem [thread:$0]  %s1, 28672, %s41, [#allocation6], 256, 256, 16
    $region9: #{tpu_custom_call.1} parent=1 // pred_fallthru
      _
    // Predicated region
    $region10: #{tpu_custom_call.1} parent=1 // pred_check
      _
    $region11: #{tpu_custom_call.1} parent=1 // pred_check_branch
      %48 = sbr.rel (0) target = $region13
    $region12: #{tpu_custom_call.1} parent=1 // pred_region
      _
    $region13: #{tpu_custom_call.1} parent=1 // pred_fallthru
      _
    // Predicated region
    $region14: #{tpu_custom_call.1} parent=1 // pred_check
      _
    $region15: #{tpu_custom_call.1} parent=1 // pred_check_branch
      %50 = sbr.rel (0) target = $region17
    $region16: #{tpu_custom_call.1} parent=1 // pred_region
      %s52 = ssub.s32 8192, 8192
      %53 = vsyncadd [#allocation6], %s52
      %s54 = sshll.u32 [#allocation7], 4
      %s55 = int_to_ptr.vmem [resolvable:$true] %s54
      %60 = dma.hbm_to_vmem [thread:$0]  %s3, 8192, %s55, [#allocation6], 128, 128, 8
    $region17: #{tpu_custom_call.1} parent=1 // pred_fallthru
      _
    // Predicated region
    $region18: #{tpu_custom_call.1} parent=1 // pred_check
      _
    $region19: #{tpu_custom_call.1} parent=1 // pred_check_branch
      %62 = sbr.rel (0) target = $region21
    $region20: #{tpu_custom_call.1} parent=1 // pred_region
      _
    $region21: #{tpu_custom_call.1} parent=1 // pred_fallthru
      _
    // Predicated region
    $region22: #{tpu_custom_call.1} parent=1 // pred_check
      _
    $region23: #{tpu_custom_call.1} parent=1 // pred_check_branch
      %64 = sbr.rel (0) target = $region25
    $region24: #{tpu_custom_call.1} parent=1 // pred_region
      %s66 = ssub.s32 4096, 4096
      %67 = vsyncadd [#allocation9], %s66
      %s68 = sshll.u32 [#allocation8], 4
      %s69 = int_to_ptr.vmem [resolvable:$true] %s68
      %74 = dma.hbm_to_vmem [thread:$0]  %s5, 4096, %s69, [#allocation9], 128, 128, 8
    $region25: #{tpu_custom_call.1} parent=1 // pred_fallthru
      _
    // Predicated region
    $region26: #{tpu_custom_call.1} parent=1 // pred_check
      _
    $region27: #{tpu_custom_call.1} parent=1 // pred_check_branch
      %76 = sbr.rel (0) target = $region29
    $region28: #{tpu_custom_call.1} parent=1 // pred_region
      _
    $region29: #{tpu_custom_call.1} parent=1 // pred_fallthru
      _
    // Predicated region
    $region30: #{tpu_custom_call.1} parent=1 // pred_check
      _
    $region31: #{tpu_custom_call.1} parent=1 // pred_check_branch
      %78 = sbr.rel (0) target = $region33
    $region32: #{tpu_custom_call.1} parent=1 // pred_region
      %s80 = ssub.s32 4096, 4096
      %81 = vsyncadd [#allocation9], %s80
      %s82 = sshll.u32 [#allocation10], 4
      %s83 = int_to_ptr.vmem [resolvable:$true] %s82
      %88 = dma.hbm_to_vmem [thread:$0]  %s7, 4096, %s83, [#allocation9], 128, 128, 8
    $region33: #{tpu_custom_call.1} parent=1 // pred_fallthru
      _
    // Predicated region
    $region34: #{tpu_custom_call.1} parent=1 // pred_check
      _
    $region35: #{tpu_custom_call.1} parent=1 // pred_check_branch
      %90 = sbr.rel (0) target = $region37
    $region36: #{tpu_custom_call.1} parent=1 // pred_region
      _
    $region37: #{tpu_custom_call.1} parent=1 // pred_fallthru
      _
    // Predicated region
    $region38: #{tpu_custom_call.1} parent=1 // pred_check
      _
    $region39: #{tpu_custom_call.1} parent=1 // pred_check_branch
      %92 = sbr.rel (0) target = $region41
    $region40: #{tpu_custom_call.1} parent=1 // pred_region
      %s94 = ssub.s32 2048, 2048
      %95 = vsyncadd [#allocation12], %s94
      %s96 = sshll.u32 [#allocation11], 4
      %s97 = int_to_ptr.vmem [resolvable:$true] %s96
      %102 = dma.hbm_to_vmem [thread:$0]  %s9, 2048, %s97, [#allocation12], 64, 64, 4
    $region41: #{tpu_custom_call.1} parent=1 // pred_fallthru
      _
    // Predicated region
    $region42: #{tpu_custom_call.1} parent=1 // pred_check
      _
    $region43: #{tpu_custom_call.1} parent=1 // pred_check_branch
      %104 = sbr.rel (0) target = $region45
    $region44: #{tpu_custom_call.1} parent=1 // pred_region
      _
    $region45: #{tpu_custom_call.1} parent=1 // pred_fallthru
      _
    // Predicated region
    $region46: #{tpu_custom_call.1} parent=1 // pred_check
      _
    $region47: #{tpu_custom_call.1} parent=1 // pred_check_branch
      %106 = sbr.rel (0) target = $region49
    $region48: #{tpu_custom_call.1} parent=1 // pred_region
      %s108 = ssub.s32 1024, 1024
      %109 = vsyncadd [#allocation12], %s108
      %s110 = sshll.u32 [#allocation13], 4
      %s111 = int_to_ptr.vmem [resolvable:$true] %s110
      %116 = dma.hbm_to_vmem [thread:$0]  %s11, 1024, %s111, [#allocation12], 64, 64, 4
    $region49: #{tpu_custom_call.1} parent=1 // pred_fallthru
      _
    // Predicated region
    $region50: #{tpu_custom_call.1} parent=1 // pred_check
      _
    $region51: #{tpu_custom_call.1} parent=1 // pred_check_branch
      %118 = sbr.rel (0) target = $region53
    $region52: #{tpu_custom_call.1} parent=1 // pred_region
      _
    $region53: #{tpu_custom_call.1} parent=1 // pred_fallthru
      _
    // Predicated region
    $region54: #{tpu_custom_call.1} parent=1 // pred_check
      _
    $region55: #{tpu_custom_call.1} parent=1 // pred_check_branch
      %120 = sbr.rel (0) target = $region57
    $region56: #{tpu_custom_call.1} parent=1 // pred_region
      %121 = dma.done [#allocation3], 896
    $region57: #{tpu_custom_call.1} parent=1 // pred_fallthru
      _
    // Predicated region
    $region58: #{tpu_custom_call.1} parent=1 // pred_check
      _
    $region59: #{tpu_custom_call.1} parent=1 // pred_check_branch
      %123 = sbr.rel (0) target = $region61
    $region60: #{tpu_custom_call.1} parent=1 // pred_region
      %124 = dma.done [#allocation6], 28672
    $region61: #{tpu_custom_call.1} parent=1 // pred_fallthru
      _
    // Predicated region
    $region62: #{tpu_custom_call.1} parent=1 // pred_check
      _
    $region63: #{tpu_custom_call.1} parent=1 // pred_check_branch
      %126 = sbr.rel (0) target = $region65
    $region64: #{tpu_custom_call.1} parent=1 // pred_region
      %127 = dma.done [#allocation6], 8192
    $region65: #{tpu_custom_call.1} parent=1 // pred_fallthru
      _
    // Predicated region
    $region66: #{tpu_custom_call.1} parent=1 // pred_check
      _
    $region67: #{tpu_custom_call.1} parent=1 // pred_check_branch
      %129 = sbr.rel (0) target = $region69
    $region68: #{tpu_custom_call.1} parent=1 // pred_region
      %130 = dma.done [#allocation9], 4096
    $region69: #{tpu_custom_call.1} parent=1 // pred_fallthru
      _
    // Predicated region
    $region70: #{tpu_custom_call.1} parent=1 // pred_check
      _
    $region71: #{tpu_custom_call.1} parent=1 // pred_check_branch
      %132 = sbr.rel (0) target = $region73
    $region72: #{tpu_custom_call.1} parent=1 // pred_region
      %133 = dma.done [#allocation9], 4096
    $region73: #{tpu_custom_call.1} parent=1 // pred_fallthru
      _
    // Predicated region
    $region74: #{tpu_custom_call.1} parent=1 // pred_check
      _
    $region75: #{tpu_custom_call.1} parent=1 // pred_check_branch
      %135 = sbr.rel (0) target = $region77
    $region76: #{tpu_custom_call.1} parent=1 // pred_region
      %136 = dma.done [#allocation12], 2048
    $region77: #{tpu_custom_call.1} parent=1 // pred_fallthru
      _
    // Predicated region
    $region78: #{tpu_custom_call.1} parent=1 // pred_check
      _
    $region79: #{tpu_custom_call.1} parent=1 // pred_check_branch
      %138 = sbr.rel (0) target = $region81
    $region80: #{tpu_custom_call.1} parent=1 // pred_region
      %139 = dma.done [#allocation12], 1024
    $region81: #{tpu_custom_call.1} parent=1 // pred_fallthru
      _
    %v141 = vld [vmem:[#allocation2] sm:$0xff]
    %v142 = vld [vmem:[#allocation2 + $0x8] sm:$0xff]
    %v143 = vld [vmem:[#allocation2 + $0x10] sm:$0xff]
    %v144 = vld [vmem:[#allocation2 + $0x18] sm:$0xf]
    %v145 = vld [vmem:[#allocation2 + $0x1c] sm:$0xff]
    %v146 = vld [vmem:[#allocation2 + $0x24] sm:$0xff]
    %v147 = vld [vmem:[#allocation2 + $0x2c] sm:$0xff]
    %v148 = vld [vmem:[#allocation2 + $0x34] sm:$0xf]
    %v149 = vld [vmem:[#allocation5] sm:$0xff]
    %v150 = vld [vmem:[#allocation5 + $0x8] sm:$0xff]
    %v151 = vld [vmem:[#allocation5 + $0x10] sm:$0xff]
    %v152 = vld [vmem:[#allocation5 + $0x18] sm:$0xff]
    %v153 = vld [vmem:[#allocation5 + $0x20] sm:$0xff]
    %v154 = vld [vmem:[#allocation5 + $0x28] sm:$0xff]
    %v155 = vld [vmem:[#allocation5 + $0x30] sm:$0xff]
    %v156 = vld [vmem:[#allocation5 + $0x38] sm:$0xff]
    %v157 = vld [vmem:[#allocation5 + $0x40] sm:$0xff]
    %v158 = vld [vmem:[#allocation5 + $0x48] sm:$0xff]
    %v159 = vld [vmem:[#allocation5 + $0x50] sm:$0xff]
    %v160 = vld [vmem:[#allocation5 + $0x58] sm:$0xff]
    %v161 = vld [vmem:[#allocation5 + $0x60] sm:$0xff]
    %v162 = vld [vmem:[#allocation5 + $0x68] sm:$0xff]
    %v163 = vld [vmem:[#allocation5 + $0x70] sm:$0xff]
    %v164 = vld [vmem:[#allocation5 + $0x78] sm:$0xff]
    %v165 = vld [vmem:[#allocation5 + $0x80] sm:$0xff]
    %v166 = vld [vmem:[#allocation5 + $0x88] sm:$0xff]
    %v167 = vld [vmem:[#allocation5 + $0x90] sm:$0xff]
    %v168 = vld [vmem:[#allocation5 + $0x98] sm:$0xff]
    %v169 = vld [vmem:[#allocation5 + $0xa0] sm:$0xff]
    %v170 = vld [vmem:[#allocation5 + $0xa8] sm:$0xff]
    %v171 = vld [vmem:[#allocation5 + $0xb0] sm:$0xff]
    %v172 = vld [vmem:[#allocation5 + $0xb8] sm:$0xff]
    %v173 = vld [vmem:[#allocation5 + $0xc0] sm:$0xff]
    %v174 = vld [vmem:[#allocation5 + $0xc8] sm:$0xff]
    %v175 = vld [vmem:[#allocation5 + $0xd0] sm:$0xff]
    %v176 = vld [vmem:[#allocation5 + $0xd8] sm:$0xff]
    %v177 = vld [vmem:[#allocation5 + $0xe0] sm:$0xff]
    %v178 = vld [vmem:[#allocation5 + $0xe8] sm:$0xff]
    %v179 = vld [vmem:[#allocation5 + $0xf0] sm:$0xff]
    %v180 = vld [vmem:[#allocation5 + $0xf8] sm:$0xff]
    %v181 = vld [vmem:[#allocation5 + $0x100] sm:$0xff]
    %v182 = vld [vmem:[#allocation5 + $0x108] sm:$0xff]
    %v183 = vld [vmem:[#allocation5 + $0x110] sm:$0xff]
    %v184 = vld [vmem:[#allocation5 + $0x118] sm:$0xff]
    %v185 = vld [vmem:[#allocation5 + $0x120] sm:$0xff]
    %v186 = vld [vmem:[#allocation5 + $0x128] sm:$0xff]
    %v187 = vld [vmem:[#allocation5 + $0x130] sm:$0xff]
    %v188 = vld [vmem:[#allocation5 + $0x138] sm:$0xff]
    %v189 = vld [vmem:[#allocation5 + $0x140] sm:$0xff]
    %v190 = vld [vmem:[#allocation5 + $0x148] sm:$0xff]
    %v191 = vld [vmem:[#allocation5 + $0x150] sm:$0xff]
    %v192 = vld [vmem:[#allocation5 + $0x158] sm:$0xff]
    %v193 = vld [vmem:[#allocation5 + $0x160] sm:$0xff]
    %v194 = vld [vmem:[#allocation5 + $0x168] sm:$0xff]
    %v195 = vld [vmem:[#allocation5 + $0x170] sm:$0xff]
    %v196 = vld [vmem:[#allocation5 + $0x178] sm:$0xff]
    %v197 = vld [vmem:[#allocation5 + $0x180] sm:$0xff]
    %v198 = vld [vmem:[#allocation5 + $0x188] sm:$0xff]
    %v199 = vld [vmem:[#allocation5 + $0x190] sm:$0xff]
    %v200 = vld [vmem:[#allocation5 + $0x198] sm:$0xff]
    %v201 = vld [vmem:[#allocation5 + $0x1a0] sm:$0xff]
    %v202 = vld [vmem:[#allocation5 + $0x1a8] sm:$0xff]
    %v203 = vld [vmem:[#allocation5 + $0x1b0] sm:$0xff]
    %v204 = vld [vmem:[#allocation5 + $0x1b8] sm:$0xff]
    %v205 = vld [vmem:[#allocation5 + $0x1c0] sm:$0xff]
    %v206 = vld [vmem:[#allocation5 + $0x1c8] sm:$0xff]
    %v207 = vld [vmem:[#allocation5 + $0x1d0] sm:$0xff]
    %v208 = vld [vmem:[#allocation5 + $0x1d8] sm:$0xff]
    %v209 = vld [vmem:[#allocation5 + $0x1e0] sm:$0xff]
    %v210 = vld [vmem:[#allocation5 + $0x1e8] sm:$0xff]
    %v211 = vld [vmem:[#allocation5 + $0x1f0] sm:$0xff]
    %v212 = vld [vmem:[#allocation5 + $0x1f8] sm:$0xff]
    %v213 = vld [vmem:[#allocation5 + $0x200] sm:$0xff]
    %v214 = vld [vmem:[#allocation5 + $0x208] sm:$0xff]
    %v215 = vld [vmem:[#allocation5 + $0x210] sm:$0xff]
    %v216 = vld [vmem:[#allocation5 + $0x218] sm:$0xff]
    %v217 = vld [vmem:[#allocation5 + $0x220] sm:$0xff]
    %v218 = vld [vmem:[#allocation5 + $0x228] sm:$0xff]
    %v219 = vld [vmem:[#allocation5 + $0x230] sm:$0xff]
    %v220 = vld [vmem:[#allocation5 + $0x238] sm:$0xff]
    %v221 = vld [vmem:[#allocation5 + $0x240] sm:$0xff]
    %v222 = vld [vmem:[#allocation5 + $0x248] sm:$0xff]
    %v223 = vld [vmem:[#allocation5 + $0x250] sm:$0xff]
    %v224 = vld [vmem:[#allocation5 + $0x258] sm:$0xff]
    %v225 = vld [vmem:[#allocation5 + $0x260] sm:$0xff]
    %v226 = vld [vmem:[#allocation5 + $0x268] sm:$0xff]
    %v227 = vld [vmem:[#allocation5 + $0x270] sm:$0xff]
    %v228 = vld [vmem:[#allocation5 + $0x278] sm:$0xff]
    %v229 = vld [vmem:[#allocation5 + $0x280] sm:$0xff]
    %v230 = vld [vmem:[#allocation5 + $0x288] sm:$0xff]
    %v231 = vld [vmem:[#allocation5 + $0x290] sm:$0xff]
    %v232 = vld [vmem:[#allocation5 + $0x298] sm:$0xff]
    %v233 = vld [vmem:[#allocation5 + $0x2a0] sm:$0xff]
    %v234 = vld [vmem:[#allocation5 + $0x2a8] sm:$0xff]
    %v235 = vld [vmem:[#allocation5 + $0x2b0] sm:$0xff]
    %v236 = vld [vmem:[#allocation5 + $0x2b8] sm:$0xff]
    %v237 = vld [vmem:[#allocation5 + $0x2c0] sm:$0xff]
    %v238 = vld [vmem:[#allocation5 + $0x2c8] sm:$0xff]
    %v239 = vld [vmem:[#allocation5 + $0x2d0] sm:$0xff]
    %v240 = vld [vmem:[#allocation5 + $0x2d8] sm:$0xff]
    %v241 = vld [vmem:[#allocation5 + $0x2e0] sm:$0xff]
    %v242 = vld [vmem:[#allocation5 + $0x2e8] sm:$0xff]
    %v243 = vld [vmem:[#allocation5 + $0x2f0] sm:$0xff]
    %v244 = vld [vmem:[#allocation5 + $0x2f8] sm:$0xff]
    %v245 = vld [vmem:[#allocation5 + $0x300] sm:$0xff]
    %v246 = vld [vmem:[#allocation5 + $0x308] sm:$0xff]
    %v247 = vld [vmem:[#allocation5 + $0x310] sm:$0xff]
    %v248 = vld [vmem:[#allocation5 + $0x318] sm:$0xff]
    %v249 = vld [vmem:[#allocation5 + $0x320] sm:$0xff]
    %v250 = vld [vmem:[#allocation5 + $0x328] sm:$0xff]
    %v251 = vld [vmem:[#allocation5 + $0x330] sm:$0xff]
    %v252 = vld [vmem:[#allocation5 + $0x338] sm:$0xff]
    %v253 = vld [vmem:[#allocation5 + $0x340] sm:$0xff]
    %v254 = vld [vmem:[#allocation5 + $0x348] sm:$0xff]
    %v255 = vld [vmem:[#allocation5 + $0x350] sm:$0xff]
    %v256 = vld [vmem:[#allocation5 + $0x358] sm:$0xff]
    %v257 = vld [vmem:[#allocation5 + $0x360] sm:$0xff]
    %v258 = vld [vmem:[#allocation5 + $0x368] sm:$0xff]
    %v259 = vld [vmem:[#allocation5 + $0x370] sm:$0xff]
    %v260 = vld [vmem:[#allocation5 + $0x378] sm:$0xff]
    %v261 = vld [vmem:[#allocation5 + $0x380] sm:$0xff]
    %v262 = vld [vmem:[#allocation5 + $0x388] sm:$0xff]
    %v263 = vld [vmem:[#allocation5 + $0x390] sm:$0xff]
    %v264 = vld [vmem:[#allocation5 + $0x398] sm:$0xff]
    %v265 = vld [vmem:[#allocation5 + $0x3a0] sm:$0xff]
    %v266 = vld [vmem:[#allocation5 + $0x3a8] sm:$0xff]
    %v267 = vld [vmem:[#allocation5 + $0x3b0] sm:$0xff]
    %v268 = vld [vmem:[#allocation5 + $0x3b8] sm:$0xff]
    %v269 = vld [vmem:[#allocation5 + $0x3c0] sm:$0xff]
    %v270 = vld [vmem:[#allocation5 + $0x3c8] sm:$0xff]
    %v271 = vld [vmem:[#allocation5 + $0x3d0] sm:$0xff]
    %v272 = vld [vmem:[#allocation5 + $0x3d8] sm:$0xff]
    %v273 = vld [vmem:[#allocation5 + $0x3e0] sm:$0xff]
    %v274 = vld [vmem:[#allocation5 + $0x3e8] sm:$0xff]
    %v275 = vld [vmem:[#allocation5 + $0x3f0] sm:$0xff]
    %v276 = vld [vmem:[#allocation5 + $0x3f8] sm:$0xff]
    %v277 = vld [vmem:[#allocation5 + $0x400] sm:$0xff]
    %v278 = vld [vmem:[#allocation5 + $0x408] sm:$0xff]
    %v279 = vld [vmem:[#allocation5 + $0x410] sm:$0xff]
    %v280 = vld [vmem:[#allocation5 + $0x418] sm:$0xff]
    %v281 = vld [vmem:[#allocation5 + $0x420] sm:$0xff]
    %v282 = vld [vmem:[#allocation5 + $0x428] sm:$0xff]
    %v283 = vld [vmem:[#allocation5 + $0x430] sm:$0xff]
    %v284 = vld [vmem:[#allocation5 + $0x438] sm:$0xff]
    %v285 = vld [vmem:[#allocation5 + $0x440] sm:$0xff]
    %v286 = vld [vmem:[#allocation5 + $0x448] sm:$0xff]
    %v287 = vld [vmem:[#allocation5 + $0x450] sm:$0xff]
    %v288 = vld [vmem:[#allocation5 + $0x458] sm:$0xff]
    %v289 = vld [vmem:[#allocation5 + $0x460] sm:$0xff]
    %v290 = vld [vmem:[#allocation5 + $0x468] sm:$0xff]
    %v291 = vld [vmem:[#allocation5 + $0x470] sm:$0xff]
    %v292 = vld [vmem:[#allocation5 + $0x478] sm:$0xff]
    %v293 = vld [vmem:[#allocation5 + $0x480] sm:$0xff]
    %v294 = vld [vmem:[#allocation5 + $0x488] sm:$0xff]
    %v295 = vld [vmem:[#allocation5 + $0x490] sm:$0xff]
    %v296 = vld [vmem:[#allocation5 + $0x498] sm:$0xff]
    %v297 = vld [vmem:[#allocation5 + $0x4a0] sm:$0xff]
    %v298 = vld [vmem:[#allocation5 + $0x4a8] sm:$0xff]
    %v299 = vld [vmem:[#allocation5 + $0x4b0] sm:$0xff]
    %v300 = vld [vmem:[#allocation5 + $0x4b8] sm:$0xff]
    %v301 = vld [vmem:[#allocation5 + $0x4c0] sm:$0xff]
    %v302 = vld [vmem:[#allocation5 + $0x4c8] sm:$0xff]
    %v303 = vld [vmem:[#allocation5 + $0x4d0] sm:$0xff]
    %v304 = vld [vmem:[#allocation5 + $0x4d8] sm:$0xff]
    %v305 = vld [vmem:[#allocation5 + $0x4e0] sm:$0xff]
    %v306 = vld [vmem:[#allocation5 + $0x4e8] sm:$0xff]
    %v307 = vld [vmem:[#allocation5 + $0x4f0] sm:$0xff]
    %v308 = vld [vmem:[#allocation5 + $0x4f8] sm:$0xff]
    %v309 = vld [vmem:[#allocation5 + $0x500] sm:$0xff]
    %v310 = vld [vmem:[#allocation5 + $0x508] sm:$0xff]
    %v311 = vld [vmem:[#allocation5 + $0x510] sm:$0xff]
    %v312 = vld [vmem:[#allocation5 + $0x518] sm:$0xff]
    %v313 = vld [vmem:[#allocation5 + $0x520] sm:$0xff]
    %v314 = vld [vmem:[#allocation5 + $0x528] sm:$0xff]
    %v315 = vld [vmem:[#allocation5 + $0x530] sm:$0xff]
    %v316 = vld [vmem:[#allocation5 + $0x538] sm:$0xff]
    %v317 = vld [vmem:[#allocation5 + $0x540] sm:$0xff]
    %v318 = vld [vmem:[#allocation5 + $0x548] sm:$0xff]
    %v319 = vld [vmem:[#allocation5 + $0x550] sm:$0xff]
    %v320 = vld [vmem:[#allocation5 + $0x558] sm:$0xff]
    %v321 = vld [vmem:[#allocation5 + $0x560] sm:$0xff]
    %v322 = vld [vmem:[#allocation5 + $0x568] sm:$0xff]
    %v323 = vld [vmem:[#allocation5 + $0x570] sm:$0xff]
    %v324 = vld [vmem:[#allocation5 + $0x578] sm:$0xff]
    %v325 = vld [vmem:[#allocation5 + $0x580] sm:$0xff]
    %v326 = vld [vmem:[#allocation5 + $0x588] sm:$0xff]
    %v327 = vld [vmem:[#allocation5 + $0x590] sm:$0xff]
    %v328 = vld [vmem:[#allocation5 + $0x598] sm:$0xff]
    %v329 = vld [vmem:[#allocation5 + $0x5a0] sm:$0xff]
    %v330 = vld [vmem:[#allocation5 + $0x5a8] sm:$0xff]
    %v331 = vld [vmem:[#allocation5 + $0x5b0] sm:$0xff]
    %v332 = vld [vmem:[#allocation5 + $0x5b8] sm:$0xff]
    %v333 = vld [vmem:[#allocation5 + $0x5c0] sm:$0xff]
    %v334 = vld [vmem:[#allocation5 + $0x5c8] sm:$0xff]
    %v335 = vld [vmem:[#allocation5 + $0x5d0] sm:$0xff]
    %v336 = vld [vmem:[#allocation5 + $0x5d8] sm:$0xff]
    %v337 = vld [vmem:[#allocation5 + $0x5e0] sm:$0xff]
    %v338 = vld [vmem:[#allocation5 + $0x5e8] sm:$0xff]
    %v339 = vld [vmem:[#allocation5 + $0x5f0] sm:$0xff]
    %v340 = vld [vmem:[#allocation5 + $0x5f8] sm:$0xff]
    %v341 = vld [vmem:[#allocation5 + $0x600] sm:$0xff]
    %v342 = vld [vmem:[#allocation5 + $0x608] sm:$0xff]
    %v343 = vld [vmem:[#allocation5 + $0x610] sm:$0xff]
    %v344 = vld [vmem:[#allocation5 + $0x618] sm:$0xff]
    %v345 = vld [vmem:[#allocation5 + $0x620] sm:$0xff]
    %v346 = vld [vmem:[#allocation5 + $0x628] sm:$0xff]
    %v347 = vld [vmem:[#allocation5 + $0x630] sm:$0xff]
    %v348 = vld [vmem:[#allocation5 + $0x638] sm:$0xff]
    %v349 = vld [vmem:[#allocation5 + $0x640] sm:$0xff]
    %v350 = vld [vmem:[#allocation5 + $0x648] sm:$0xff]
    %v351 = vld [vmem:[#allocation5 + $0x650] sm:$0xff]
    %v352 = vld [vmem:[#allocation5 + $0x658] sm:$0xff]
    %v353 = vld [vmem:[#allocation5 + $0x660] sm:$0xff]
    %v354 = vld [vmem:[#allocation5 + $0x668] sm:$0xff]
    %v355 = vld [vmem:[#allocation5 + $0x670] sm:$0xff]
    %v356 = vld [vmem:[#allocation5 + $0x678] sm:$0xff]
    %v357 = vld [vmem:[#allocation5 + $0x680] sm:$0xff]
    %v358 = vld [vmem:[#allocation5 + $0x688] sm:$0xff]
    %v359 = vld [vmem:[#allocation5 + $0x690] sm:$0xff]
    %v360 = vld [vmem:[#allocation5 + $0x698] sm:$0xff]
    %v361 = vld [vmem:[#allocation5 + $0x6a0] sm:$0xff]
    %v362 = vld [vmem:[#allocation5 + $0x6a8] sm:$0xff]
    %v363 = vld [vmem:[#allocation5 + $0x6b0] sm:$0xff]
    %v364 = vld [vmem:[#allocation5 + $0x6b8] sm:$0xff]
    %v365 = vld [vmem:[#allocation5 + $0x6c0] sm:$0xff]
    %v366 = vld [vmem:[#allocation5 + $0x6c8] sm:$0xff]
    %v367 = vld [vmem:[#allocation5 + $0x6d0] sm:$0xff]
    %v368 = vld [vmem:[#allocation5 + $0x6d8] sm:$0xff]
    %v369 = vld [vmem:[#allocation5 + $0x6e0] sm:$0xff]
    %v370 = vld [vmem:[#allocation5 + $0x6e8] sm:$0xff]
    %v371 = vld [vmem:[#allocation5 + $0x6f0] sm:$0xff]
    %v372 = vld [vmem:[#allocation5 + $0x6f8] sm:$0xff]
    %v381 = vunpack.c.l.b16 %v141
    %v382 = vunpack.c.h.b16 %v141
    %v383 = vunpack.c.l.b16 %v142
    %v384 = vunpack.c.h.b16 %v142
    %v385 = vunpack.c.l.b16 %v143
    %v386 = vunpack.c.h.b16 %v143
    %v387 = vunpack.c.l.b16 %v144
    %v388 = vunpack.c.l.b16 %v145
    %v389 = vunpack.c.h.b16 %v145
    %v390 = vunpack.c.l.b16 %v146
    %v391 = vunpack.c.h.b16 %v146
    %v392 = vunpack.c.l.b16 %v147
    %v393 = vunpack.c.h.b16 %v147
    %v394 = vunpack.c.l.b16 %v148
    %v395 = vpack.c.b16 %v388, %v381
    %v396 = vpack.c.b16 %v389, %v382
    %v397 = vpack.c.b16 %v390, %v383
    %v398 = vpack.c.b16 %v391, %v384
    %v399 = vpack.c.b16 %v392, %v385
    %v400 = vpack.c.b16 %v393, %v386
    %v401 = vpack.c.b16 %v394, %v387
    %v633 = vunpack.c.l.b16 %v149
    %v634 = vunpack.c.h.b16 %v149
    %v635 = vunpack.c.l.b16 %v150
    %v636 = vunpack.c.h.b16 %v150
    %v637 = vunpack.c.l.b16 %v151
    %v638 = vunpack.c.h.b16 %v151
    %v639 = vunpack.c.l.b16 %v152
    %v640 = vunpack.c.h.b16 %v152
    %v641 = vunpack.c.l.b16 %v153
    %v642 = vunpack.c.h.b16 %v153
    %v643 = vunpack.c.l.b16 %v154
    %v644 = vunpack.c.h.b16 %v154
    %v645 = vunpack.c.l.b16 %v155
    %v646 = vunpack.c.h.b16 %v155
    %v647 = vunpack.c.l.b16 %v156
    %v648 = vunpack.c.h.b16 %v156
    %v649 = vunpack.c.l.b16 %v157
    %v650 = vunpack.c.h.b16 %v157
    %v651 = vunpack.c.l.b16 %v158
    %v652 = vunpack.c.h.b16 %v158
    %v653 = vunpack.c.l.b16 %v159
    %v654 = vunpack.c.h.b16 %v159
    %v655 = vunpack.c.l.b16 %v160
    %v656 = vunpack.c.h.b16 %v160
    %v657 = vunpack.c.l.b16 %v161
    %v658 = vunpack.c.h.b16 %v161
    %v659 = vunpack.c.l.b16 %v162
    %v660 = vunpack.c.h.b16 %v162
    %v661 = vunpack.c.l.b16 %v163
    %v662 = vunpack.c.h.b16 %v163
    %v663 = vunpack.c.l.b16 %v164
    %v664 = vunpack.c.h.b16 %v164
    %v665 = vunpack.c.l.b16 %v165
    %v666 = vunpack.c.h.b16 %v165
    %v667 = vunpack.c.l.b16 %v166
    %v668 = vunpack.c.h.b16 %v166
    %v669 = vunpack.c.l.b16 %v167
    %v670 = vunpack.c.h.b16 %v167
    %v671 = vunpack.c.l.b16 %v168
    %v672 = vunpack.c.h.b16 %v168
    %v673 = vunpack.c.l.b16 %v169
    %v674 = vunpack.c.h.b16 %v169
    %v675 = vunpack.c.l.b16 %v170
    %v676 = vunpack.c.h.b16 %v170
    %v677 = vunpack.c.l.b16 %v171
    %v678 = vunpack.c.h.b16 %v171
    %v679 = vunpack.c.l.b16 %v172
    %v680 = vunpack.c.h.b16 %v172
    %v681 = vunpack.c.l.b16 %v173
    %v682 = vunpack.c.h.b16 %v173
    %v683 = vunpack.c.l.b16 %v174
    %v684 = vunpack.c.h.b16 %v174
    %v685 = vunpack.c.l.b16 %v175
    %v686 = vunpack.c.h.b16 %v175
    %v687 = vunpack.c.l.b16 %v176
    %v688 = vunpack.c.h.b16 %v176
    %v689 = vunpack.c.l.b16 %v177
    %v690 = vunpack.c.h.b16 %v177
    %v691 = vunpack.c.l.b16 %v178
    %v692 = vunpack.c.h.b16 %v178
    %v693 = vunpack.c.l.b16 %v179
    %v694 = vunpack.c.h.b16 %v179
    %v695 = vunpack.c.l.b16 %v180
    %v696 = vunpack.c.h.b16 %v180
    %v697 = vunpack.c.l.b16 %v181
    %v698 = vunpack.c.h.b16 %v181
    %v699 = vunpack.c.l.b16 %v182
    %v700 = vunpack.c.h.b16 %v182
    %v701 = vunpack.c.l.b16 %v183
    %v702 = vunpack.c.h.b16 %v183
    %v703 = vunpack.c.l.b16 %v184
    %v704 = vunpack.c.h.b16 %v184
    %v705 = vunpack.c.l.b16 %v185
    %v706 = vunpack.c.h.b16 %v185
    %v707 = vunpack.c.l.b16 %v186
    %v708 = vunpack.c.h.b16 %v186
    %v709 = vunpack.c.l.b16 %v187
    %v710 = vunpack.c.h.b16 %v187
    %v711 = vunpack.c.l.b16 %v188
    %v712 = vunpack.c.h.b16 %v188
    %v713 = vunpack.c.l.b16 %v189
    %v714 = vunpack.c.h.b16 %v189
    %v715 = vunpack.c.l.b16 %v190
    %v716 = vunpack.c.h.b16 %v190
    %v717 = vunpack.c.l.b16 %v191
    %v718 = vunpack.c.h.b16 %v191
    %v719 = vunpack.c.l.b16 %v192
    %v720 = vunpack.c.h.b16 %v192
    %v721 = vunpack.c.l.b16 %v193
    %v722 = vunpack.c.h.b16 %v193
    %v723 = vunpack.c.l.b16 %v194
    %v724 = vunpack.c.h.b16 %v194
    %v725 = vunpack.c.l.b16 %v195
    %v726 = vunpack.c.h.b16 %v195
    %v727 = vunpack.c.l.b16 %v196
    %v728 = vunpack.c.h.b16 %v196
    %v729 = vunpack.c.l.b16 %v197
    %v730 = vunpack.c.h.b16 %v197
    %v731 = vunpack.c.l.b16 %v198
    %v732 = vunpack.c.h.b16 %v198
    %v733 = vunpack.c.l.b16 %v199
    %v734 = vunpack.c.h.b16 %v199
    %v735 = vunpack.c.l.b16 %v200
    %v736 = vunpack.c.h.b16 %v200
    %v737 = vunpack.c.l.b16 %v201
    %v738 = vunpack.c.h.b16 %v201
    %v739 = vunpack.c.l.b16 %v202
    %v740 = vunpack.c.h.b16 %v202
    %v741 = vunpack.c.l.b16 %v203
    %v742 = vunpack.c.h.b16 %v203
    %v743 = vunpack.c.l.b16 %v204
    %v744 = vunpack.c.h.b16 %v204
    %v745 = vunpack.c.l.b16 %v205
    %v746 = vunpack.c.h.b16 %v205
    %v747 = vunpack.c.l.b16 %v206
    %v748 = vunpack.c.h.b16 %v206
    %v749 = vunpack.c.l.b16 %v207
    %v750 = vunpack.c.h.b16 %v207
    %v751 = vunpack.c.l.b16 %v208
    %v752 = vunpack.c.h.b16 %v208
    %v753 = vunpack.c.l.b16 %v209
    %v754 = vunpack.c.h.b16 %v209
    %v755 = vunpack.c.l.b16 %v210
    %v756 = vunpack.c.h.b16 %v210
    %v757 = vunpack.c.l.b16 %v211
    %v758 = vunpack.c.h.b16 %v211
    %v759 = vunpack.c.l.b16 %v212
    %v760 = vunpack.c.h.b16 %v212
    %v761 = vunpack.c.l.b16 %v213
    %v762 = vunpack.c.h.b16 %v213
    %v763 = vunpack.c.l.b16 %v214
    %v764 = vunpack.c.h.b16 %v214
    %v765 = vunpack.c.l.b16 %v215
    %v766 = vunpack.c.h.b16 %v215
    %v767 = vunpack.c.l.b16 %v216
    %v768 = vunpack.c.h.b16 %v216
    %v769 = vunpack.c.l.b16 %v217
    %v770 = vunpack.c.h.b16 %v217
    %v771 = vunpack.c.l.b16 %v218
    %v772 = vunpack.c.h.b16 %v218
    %v773 = vunpack.c.l.b16 %v219
    %v774 = vunpack.c.h.b16 %v219
    %v775 = vunpack.c.l.b16 %v220
    %v776 = vunpack.c.h.b16 %v220
    %v777 = vunpack.c.l.b16 %v221
    %v778 = vunpack.c.h.b16 %v221
    %v779 = vunpack.c.l.b16 %v222
    %v780 = vunpack.c.h.b16 %v222
    %v781 = vunpack.c.l.b16 %v223
    %v782 = vunpack.c.h.b16 %v223
    %v783 = vunpack.c.l.b16 %v224
    %v784 = vunpack.c.h.b16 %v224
    %v785 = vunpack.c.l.b16 %v225
    %v786 = vunpack.c.h.b16 %v225
    %v787 = vunpack.c.l.b16 %v226
    %v788 = vunpack.c.h.b16 %v226
    %v789 = vunpack.c.l.b16 %v227
    %v790 = vunpack.c.h.b16 %v227
    %v791 = vunpack.c.l.b16 %v228
    %v792 = vunpack.c.h.b16 %v228
    %v793 = vunpack.c.l.b16 %v229
    %v794 = vunpack.c.h.b16 %v229
    %v795 = vunpack.c.l.b16 %v230
    %v796 = vunpack.c.h.b16 %v230
    %v797 = vunpack.c.l.b16 %v231
    %v798 = vunpack.c.h.b16 %v231
    %v799 = vunpack.c.l.b16 %v232
    %v800 = vunpack.c.h.b16 %v232
    %v801 = vunpack.c.l.b16 %v233
    %v802 = vunpack.c.h.b16 %v233
    %v803 = vunpack.c.l.b16 %v234
    %v804 = vunpack.c.h.b16 %v234
    %v805 = vunpack.c.l.b16 %v235
    %v806 = vunpack.c.h.b16 %v235
    %v807 = vunpack.c.l.b16 %v236
    %v808 = vunpack.c.h.b16 %v236
    %v809 = vunpack.c.l.b16 %v237
    %v810 = vunpack.c.h.b16 %v237
    %v811 = vunpack.c.l.b16 %v238
    %v812 = vunpack.c.h.b16 %v238
    %v813 = vunpack.c.l.b16 %v239
    %v814 = vunpack.c.h.b16 %v239
    %v815 = vunpack.c.l.b16 %v240
    %v816 = vunpack.c.h.b16 %v240
    %v817 = vunpack.c.l.b16 %v241
    %v818 = vunpack.c.h.b16 %v241
    %v819 = vunpack.c.l.b16 %v242
    %v820 = vunpack.c.h.b16 %v242
    %v821 = vunpack.c.l.b16 %v243
    %v822 = vunpack.c.h.b16 %v243
    %v823 = vunpack.c.l.b16 %v244
    %v824 = vunpack.c.h.b16 %v244
    %v825 = vunpack.c.l.b16 %v245
    %v826 = vunpack.c.h.b16 %v245
    %v827 = vunpack.c.l.b16 %v246
    %v828 = vunpack.c.h.b16 %v246
    %v829 = vunpack.c.l.b16 %v247
    %v830 = vunpack.c.h.b16 %v247
    %v831 = vunpack.c.l.b16 %v248
    %v832 = vunpack.c.h.b16 %v248
    %v833 = vunpack.c.l.b16 %v249
    %v834 = vunpack.c.h.b16 %v249
    %v835 = vunpack.c.l.b16 %v250
    %v836 = vunpack.c.h.b16 %v250
    %v837 = vunpack.c.l.b16 %v251
    %v838 = vunpack.c.h.b16 %v251
    %v839 = vunpack.c.l.b16 %v252
    %v840 = vunpack.c.h.b16 %v252
    %v841 = vunpack.c.l.b16 %v253
    %v842 = vunpack.c.h.b16 %v253
    %v843 = vunpack.c.l.b16 %v254
    %v844 = vunpack.c.h.b16 %v254
    %v845 = vunpack.c.l.b16 %v255
    %v846 = vunpack.c.h.b16 %v255
    %v847 = vunpack.c.l.b16 %v256
    %v848 = vunpack.c.h.b16 %v256
    %v849 = vunpack.c.l.b16 %v257
    %v850 = vunpack.c.h.b16 %v257
    %v851 = vunpack.c.l.b16 %v258
    %v852 = vunpack.c.h.b16 %v258
    %v853 = vunpack.c.l.b16 %v259
    %v854 = vunpack.c.h.b16 %v259
    %v855 = vunpack.c.l.b16 %v260
    %v856 = vunpack.c.h.b16 %v260
    %v857 = vunpack.c.l.b16 %v261
    %v858 = vunpack.c.h.b16 %v261
    %v859 = vunpack.c.l.b16 %v262
    %v860 = vunpack.c.h.b16 %v262
    %v861 = vunpack.c.l.b16 %v263
    %v862 = vunpack.c.h.b16 %v263
    %v863 = vunpack.c.l.b16 %v264
    %v864 = vunpack.c.h.b16 %v264
    %v865 = vunpack.c.l.b16 %v265
    %v866 = vunpack.c.h.b16 %v265
    %v867 = vunpack.c.l.b16 %v266
    %v868 = vunpack.c.h.b16 %v266
    %v869 = vunpack.c.l.b16 %v267
    %v870 = vunpack.c.h.b16 %v267
    %v871 = vunpack.c.l.b16 %v268
    %v872 = vunpack.c.h.b16 %v268
    %v873 = vunpack.c.l.b16 %v269
    %v874 = vunpack.c.h.b16 %v269
    %v875 = vunpack.c.l.b16 %v270
    %v876 = vunpack.c.h.b16 %v270
    %v877 = vunpack.c.l.b16 %v271
    %v878 = vunpack.c.h.b16 %v271
    %v879 = vunpack.c.l.b16 %v272
    %v880 = vunpack.c.h.b16 %v272
    %v881 = vunpack.c.l.b16 %v273
    %v882 = vunpack.c.h.b16 %v273
    %v883 = vunpack.c.l.b16 %v274
    %v884 = vunpack.c.h.b16 %v274
    %v885 = vunpack.c.l.b16 %v275
    %v886 = vunpack.c.h.b16 %v275
    %v887 = vunpack.c.l.b16 %v276
    %v888 = vunpack.c.h.b16 %v276
    %v889 = vunpack.c.l.b16 %v277
    %v890 = vunpack.c.h.b16 %v277
    %v891 = vunpack.c.l.b16 %v278
    %v892 = vunpack.c.h.b16 %v278
    %v893 = vunpack.c.l.b16 %v279
    %v894 = vunpack.c.h.b16 %v279
    %v895 = vunpack.c.l.b16 %v280
    %v896 = vunpack.c.h.b16 %v280
    %v897 = vunpack.c.l.b16 %v281
    %v898 = vunpack.c.h.b16 %v281
    %v899 = vunpack.c.l.b16 %v282
    %v900 = vunpack.c.h.b16 %v282
    %v901 = vunpack.c.l.b16 %v283
    %v902 = vunpack.c.h.b16 %v283
    %v903 = vunpack.c.l.b16 %v284
    %v904 = vunpack.c.h.b16 %v284
    %v905 = vunpack.c.l.b16 %v285
    %v906 = vunpack.c.h.b16 %v285
    %v907 = vunpack.c.l.b16 %v286
    %v908 = vunpack.c.h.b16 %v286
    %v909 = vunpack.c.l.b16 %v287
    %v910 = vunpack.c.h.b16 %v287
    %v911 = vunpack.c.l.b16 %v288
    %v912 = vunpack.c.h.b16 %v288
    %v913 = vunpack.c.l.b16 %v289
    %v914 = vunpack.c.h.b16 %v289
    %v915 = vunpack.c.l.b16 %v290
    %v916 = vunpack.c.h.b16 %v290
    %v917 = vunpack.c.l.b16 %v291
    %v918 = vunpack.c.h.b16 %v291
    %v919 = vunpack.c.l.b16 %v292
    %v920 = vunpack.c.h.b16 %v292
    %v921 = vunpack.c.l.b16 %v293
    %v922 = vunpack.c.h.b16 %v293
    %v923 = vunpack.c.l.b16 %v294
    %v924 = vunpack.c.h.b16 %v294
    %v925 = vunpack.c.l.b16 %v295
    %v926 = vunpack.c.h.b16 %v295
    %v927 = vunpack.c.l.b16 %v296
    %v928 = vunpack.c.h.b16 %v296
    %v929 = vunpack.c.l.b16 %v297
    %v930 = vunpack.c.h.b16 %v297
    %v931 = vunpack.c.l.b16 %v298
    %v932 = vunpack.c.h.b16 %v298
    %v933 = vunpack.c.l.b16 %v299
    %v934 = vunpack.c.h.b16 %v299
    %v935 = vunpack.c.l.b16 %v300
    %v936 = vunpack.c.h.b16 %v300
    %v937 = vunpack.c.l.b16 %v301
    %v938 = vunpack.c.h.b16 %v301
    %v939 = vunpack.c.l.b16 %v302
    %v940 = vunpack.c.h.b16 %v302
    %v941 = vunpack.c.l.b16 %v303
    %v942 = vunpack.c.h.b16 %v303
    %v943 = vunpack.c.l.b16 %v304
    %v944 = vunpack.c.h.b16 %v304
    %v945 = vunpack.c.l.b16 %v305
    %v946 = vunpack.c.h.b16 %v305
    %v947 = vunpack.c.l.b16 %v306
    %v948 = vunpack.c.h.b16 %v306
    %v949 = vunpack.c.l.b16 %v307
    %v950 = vunpack.c.h.b16 %v307
    %v951 = vunpack.c.l.b16 %v308
    %v952 = vunpack.c.h.b16 %v308
    %v953 = vunpack.c.l.b16 %v309
    %v954 = vunpack.c.h.b16 %v309
    %v955 = vunpack.c.l.b16 %v310
    %v956 = vunpack.c.h.b16 %v310
    %v957 = vunpack.c.l.b16 %v311
    %v958 = vunpack.c.h.b16 %v311
    %v959 = vunpack.c.l.b16 %v312
    %v960 = vunpack.c.h.b16 %v312
    %v961 = vunpack.c.l.b16 %v313
    %v962 = vunpack.c.h.b16 %v313
    %v963 = vunpack.c.l.b16 %v314
    %v964 = vunpack.c.h.b16 %v314
    %v965 = vunpack.c.l.b16 %v315
    %v966 = vunpack.c.h.b16 %v315
    %v967 = vunpack.c.l.b16 %v316
    %v968 = vunpack.c.h.b16 %v316
    %v969 = vunpack.c.l.b16 %v317
    %v970 = vunpack.c.h.b16 %v317
    %v971 = vunpack.c.l.b16 %v318
    %v972 = vunpack.c.h.b16 %v318
    %v973 = vunpack.c.l.b16 %v319
    %v974 = vunpack.c.h.b16 %v319
    %v975 = vunpack.c.l.b16 %v320
    %v976 = vunpack.c.h.b16 %v320
    %v977 = vunpack.c.l.b16 %v321
    %v978 = vunpack.c.h.b16 %v321
    %v979 = vunpack.c.l.b16 %v322
    %v980 = vunpack.c.h.b16 %v322
    %v981 = vunpack.c.l.b16 %v323
    %v982 = vunpack.c.h.b16 %v323
    %v983 = vunpack.c.l.b16 %v324
    %v984 = vunpack.c.h.b16 %v324
    %v985 = vunpack.c.l.b16 %v325
    %v986 = vunpack.c.h.b16 %v325
    %v987 = vunpack.c.l.b16 %v326
    %v988 = vunpack.c.h.b16 %v326
    %v989 = vunpack.c.l.b16 %v327
    %v990 = vunpack.c.h.b16 %v327
    %v991 = vunpack.c.l.b16 %v328
    %v992 = vunpack.c.h.b16 %v328
    %v993 = vunpack.c.l.b16 %v329
    %v994 = vunpack.c.h.b16 %v329
    %v995 = vunpack.c.l.b16 %v330
    %v996 = vunpack.c.h.b16 %v330
    %v997 = vunpack.c.l.b16 %v331
    %v998 = vunpack.c.h.b16 %v331
    %v999 = vunpack.c.l.b16 %v332
    %v1000 = vunpack.c.h.b16 %v332
    %v1001 = vunpack.c.l.b16 %v333
    %v1002 = vunpack.c.h.b16 %v333
    %v1003 = vunpack.c.l.b16 %v334
    %v1004 = vunpack.c.h.b16 %v334
    %v1005 = vunpack.c.l.b16 %v335
    %v1006 = vunpack.c.h.b16 %v335
    %v1007 = vunpack.c.l.b16 %v336
    %v1008 = vunpack.c.h.b16 %v336
    %v1009 = vunpack.c.l.b16 %v337
    %v1010 = vunpack.c.h.b16 %v337
    %v1011 = vunpack.c.l.b16 %v338
    %v1012 = vunpack.c.h.b16 %v338
    %v1013 = vunpack.c.l.b16 %v339
    %v1014 = vunpack.c.h.b16 %v339
    %v1015 = vunpack.c.l.b16 %v340
    %v1016 = vunpack.c.h.b16 %v340
    %v1017 = vunpack.c.l.b16 %v341
    %v1018 = vunpack.c.h.b16 %v341
    %v1019 = vunpack.c.l.b16 %v342
    %v1020 = vunpack.c.h.b16 %v342
    %v1021 = vunpack.c.l.b16 %v343
    %v1022 = vunpack.c.h.b16 %v343
    %v1023 = vunpack.c.l.b16 %v344
    %v1024 = vunpack.c.h.b16 %v344
    %v1025 = vunpack.c.l.b16 %v345
    %v1026 = vunpack.c.h.b16 %v345
    %v1027 = vunpack.c.l.b16 %v346
    %v1028 = vunpack.c.h.b16 %v346
    %v1029 = vunpack.c.l.b16 %v347
    %v1030 = vunpack.c.h.b16 %v347
    %v1031 = vunpack.c.l.b16 %v348
    %v1032 = vunpack.c.h.b16 %v348
    %v1033 = vunpack.c.l.b16 %v349
    %v1034 = vunpack.c.h.b16 %v349
    %v1035 = vunpack.c.l.b16 %v350
    %v1036 = vunpack.c.h.b16 %v350
    %v1037 = vunpack.c.l.b16 %v351
    %v1038 = vunpack.c.h.b16 %v351
    %v1039 = vunpack.c.l.b16 %v352
    %v1040 = vunpack.c.h.b16 %v352
    %v1041 = vunpack.c.l.b16 %v353
    %v1042 = vunpack.c.h.b16 %v353
    %v1043 = vunpack.c.l.b16 %v354
    %v1044 = vunpack.c.h.b16 %v354
    %v1045 = vunpack.c.l.b16 %v355
    %v1046 = vunpack.c.h.b16 %v355
    %v1047 = vunpack.c.l.b16 %v356
    %v1048 = vunpack.c.h.b16 %v356
    %v1049 = vunpack.c.l.b16 %v357
    %v1050 = vunpack.c.h.b16 %v357
    %v1051 = vunpack.c.l.b16 %v358
    %v1052 = vunpack.c.h.b16 %v358
    %v1053 = vunpack.c.l.b16 %v359
    %v1054 = vunpack.c.h.b16 %v359
    %v1055 = vunpack.c.l.b16 %v360
    %v1056 = vunpack.c.h.b16 %v360
    %v1057 = vunpack.c.l.b16 %v361
    %v1058 = vunpack.c.h.b16 %v361
    %v1059 = vunpack.c.l.b16 %v362
    %v1060 = vunpack.c.h.b16 %v362
    %v1061 = vunpack.c.l.b16 %v363
    %v1062 = vunpack.c.h.b16 %v363
    %v1063 = vunpack.c.l.b16 %v364
    %v1064 = vunpack.c.h.b16 %v364
    %v1065 = vunpack.c.l.b16 %v365
    %v1066 = vunpack.c.h.b16 %v365
    %v1067 = vunpack.c.l.b16 %v366
    %v1068 = vunpack.c.h.b16 %v366
    %v1069 = vunpack.c.l.b16 %v367
    %v1070 = vunpack.c.h.b16 %v367
    %v1071 = vunpack.c.l.b16 %v368
    %v1072 = vunpack.c.h.b16 %v368
    %v1073 = vunpack.c.l.b16 %v369
    %v1074 = vunpack.c.h.b16 %v369
    %v1075 = vunpack.c.l.b16 %v370
    %v1076 = vunpack.c.h.b16 %v370
    %v1077 = vunpack.c.l.b16 %v371
    %v1078 = vunpack.c.h.b16 %v371
    %v1079 = vunpack.c.l.b16 %v372
    %v1080 = vunpack.c.h.b16 %v372
    %v1081 = vpack.c.b16 %v637, %v633
    %v1082 = vpack.c.b16 %v638, %v634
    %v1083 = vpack.c.b16 %v639, %v635
    %v1084 = vpack.c.b16 %v640, %v636
    %v1085 = vpack.c.b16 %v645, %v641
    %v1086 = vpack.c.b16 %v646, %v642
    %v1087 = vpack.c.b16 %v647, %v643
    %v1088 = vpack.c.b16 %v648, %v644
    %v1089 = vpack.c.b16 %v653, %v649
    %v1090 = vpack.c.b16 %v654, %v650
    %v1091 = vpack.c.b16 %v655, %v651
    %v1092 = vpack.c.b16 %v656, %v652
    %v1093 = vpack.c.b16 %v661, %v657
    %v1094 = vpack.c.b16 %v662, %v658
    %v1095 = vpack.c.b16 %v663, %v659
    %v1096 = vpack.c.b16 %v664, %v660
    %v1097 = vpack.c.b16 %v669, %v665
    %v1098 = vpack.c.b16 %v670, %v666
    %v1099 = vpack.c.b16 %v671, %v667
    %v1100 = vpack.c.b16 %v672, %v668
    %v1101 = vpack.c.b16 %v677, %v673
    %v1102 = vpack.c.b16 %v678, %v674
    %v1103 = vpack.c.b16 %v679, %v675
    %v1104 = vpack.c.b16 %v680, %v676
    %v1105 = vpack.c.b16 %v685, %v681
    %v1106 = vpack.c.b16 %v686, %v682
    %v1107 = vpack.c.b16 %v687, %v683
    %v1108 = vpack.c.b16 %v688, %v684
    %v1109 = vpack.c.b16 %v693, %v689
    %v1110 = vpack.c.b16 %v694, %v690
    %v1111 = vpack.c.b16 %v695, %v691
    %v1112 = vpack.c.b16 %v696, %v692
    %v1113 = vpack.c.b16 %v701, %v697
    %v1114 = vpack.c.b16 %v702, %v698
    %v1115 = vpack.c.b16 %v703, %v699
    %v1116 = vpack.c.b16 %v704, %v700
    %v1117 = vpack.c.b16 %v709, %v705
    %v1118 = vpack.c.b16 %v710, %v706
    %v1119 = vpack.c.b16 %v711, %v707
    %v1120 = vpack.c.b16 %v712, %v708
    %v1121 = vpack.c.b16 %v717, %v713
    %v1122 = vpack.c.b16 %v718, %v714
    %v1123 = vpack.c.b16 %v719, %v715
    %v1124 = vpack.c.b16 %v720, %v716
    %v1125 = vpack.c.b16 %v725, %v721
    %v1126 = vpack.c.b16 %v726, %v722
    %v1127 = vpack.c.b16 %v727, %v723
    %v1128 = vpack.c.b16 %v728, %v724
    %v1129 = vpack.c.b16 %v733, %v729
    %v1130 = vpack.c.b16 %v734, %v730
    %v1131 = vpack.c.b16 %v735, %v731
    %v1132 = vpack.c.b16 %v736, %v732
    %v1133 = vpack.c.b16 %v741, %v737
    %v1134 = vpack.c.b16 %v742, %v738
    %v1135 = vpack.c.b16 %v743, %v739
    %v1136 = vpack.c.b16 %v744, %v740
    %v1137 = vpack.c.b16 %v749, %v745
    %v1138 = vpack.c.b16 %v750, %v746
    %v1139 = vpack.c.b16 %v751, %v747
    %v1140 = vpack.c.b16 %v752, %v748
    %v1141 = vpack.c.b16 %v757, %v753
    %v1142 = vpack.c.b16 %v758, %v754
    %v1143 = vpack.c.b16 %v759, %v755
    %v1144 = vpack.c.b16 %v760, %v756
    %v1145 = vpack.c.b16 %v765, %v761
    %v1146 = vpack.c.b16 %v766, %v762
    %v1147 = vpack.c.b16 %v767, %v763
    %v1148 = vpack.c.b16 %v768, %v764
    %v1149 = vpack.c.b16 %v773, %v769
    %v1150 = vpack.c.b16 %v774, %v770
    %v1151 = vpack.c.b16 %v775, %v771
    %v1152 = vpack.c.b16 %v776, %v772
    %v1153 = vpack.c.b16 %v781, %v777
    %v1154 = vpack.c.b16 %v782, %v778
    %v1155 = vpack.c.b16 %v783, %v779
    %v1156 = vpack.c.b16 %v784, %v780
    %v1157 = vpack.c.b16 %v789, %v785
    %v1158 = vpack.c.b16 %v790, %v786
    %v1159 = vpack.c.b16 %v791, %v787
    %v1160 = vpack.c.b16 %v792, %v788
    %v1161 = vpack.c.b16 %v797, %v793
    %v1162 = vpack.c.b16 %v798, %v794
    %v1163 = vpack.c.b16 %v799, %v795
    %v1164 = vpack.c.b16 %v800, %v796
    %v1165 = vpack.c.b16 %v805, %v801
    %v1166 = vpack.c.b16 %v806, %v802
    %v1167 = vpack.c.b16 %v807, %v803
    %v1168 = vpack.c.b16 %v808, %v804
    %v1169 = vpack.c.b16 %v813, %v809
    %v1170 = vpack.c.b16 %v814, %v810
    %v1171 = vpack.c.b16 %v815, %v811
    %v1172 = vpack.c.b16 %v816, %v812
    %v1173 = vpack.c.b16 %v821, %v817
    %v1174 = vpack.c.b16 %v822, %v818
    %v1175 = vpack.c.b16 %v823, %v819
    %v1176 = vpack.c.b16 %v824, %v820
    %v1177 = vpack.c.b16 %v829, %v825
    %v1178 = vpack.c.b16 %v830, %v826
    %v1179 = vpack.c.b16 %v831, %v827
    %v1180 = vpack.c.b16 %v832, %v828
    %v1181 = vpack.c.b16 %v837, %v833
    %v1182 = vpack.c.b16 %v838, %v834
    %v1183 = vpack.c.b16 %v839, %v835
    %v1184 = vpack.c.b16 %v840, %v836
    %v1185 = vpack.c.b16 %v845, %v841
    %v1186 = vpack.c.b16 %v846, %v842
    %v1187 = vpack.c.b16 %v847, %v843
    %v1188 = vpack.c.b16 %v848, %v844
    %v1189 = vpack.c.b16 %v853, %v849
    %v1190 = vpack.c.b16 %v854, %v850
    %v1191 = vpack.c.b16 %v855, %v851
    %v1192 = vpack.c.b16 %v856, %v852
    %v1193 = vpack.c.b16 %v861, %v857
    %v1194 = vpack.c.b16 %v862, %v858
    %v1195 = vpack.c.b16 %v863, %v859
    %v1196 = vpack.c.b16 %v864, %v860
    %v1197 = vpack.c.b16 %v869, %v865
    %v1198 = vpack.c.b16 %v870, %v866
    %v1199 = vpack.c.b16 %v871, %v867
    %v1200 = vpack.c.b16 %v872, %v868
    %v1201 = vpack.c.b16 %v877, %v873
    %v1202 = vpack.c.b16 %v878, %v874
    %v1203 = vpack.c.b16 %v879, %v875
    %v1204 = vpack.c.b16 %v880, %v876
    %v1205 = vpack.c.b16 %v885, %v881
    %v1206 = vpack.c.b16 %v886, %v882
    %v1207 = vpack.c.b16 %v887, %v883
    %v1208 = vpack.c.b16 %v888, %v884
    %v1209 = vpack.c.b16 %v893, %v889
    %v1210 = vpack.c.b16 %v894, %v890
    %v1211 = vpack.c.b16 %v895, %v891
    %v1212 = vpack.c.b16 %v896, %v892
    %v1213 = vpack.c.b16 %v901, %v897
    %v1214 = vpack.c.b16 %v902, %v898
    %v1215 = vpack.c.b16 %v903, %v899
    %v1216 = vpack.c.b16 %v904, %v900
    %v1217 = vpack.c.b16 %v909, %v905
    %v1218 = vpack.c.b16 %v910, %v906
    %v1219 = vpack.c.b16 %v911, %v907
    %v1220 = vpack.c.b16 %v912, %v908
    %v1221 = vpack.c.b16 %v917, %v913
    %v1222 = vpack.c.b16 %v918, %v914
    %v1223 = vpack.c.b16 %v919, %v915
    %v1224 = vpack.c.b16 %v920, %v916
    %v1225 = vpack.c.b16 %v925, %v921
    %v1226 = vpack.c.b16 %v926, %v922
    %v1227 = vpack.c.b16 %v927, %v923
    %v1228 = vpack.c.b16 %v928, %v924
    %v1229 = vpack.c.b16 %v933, %v929
    %v1230 = vpack.c.b16 %v934, %v930
    %v1231 = vpack.c.b16 %v935, %v931
    %v1232 = vpack.c.b16 %v936, %v932
    %v1233 = vpack.c.b16 %v941, %v937
    %v1234 = vpack.c.b16 %v942, %v938
    %v1235 = vpack.c.b16 %v943, %v939
    %v1236 = vpack.c.b16 %v944, %v940
    %v1237 = vpack.c.b16 %v949, %v945
    %v1238 = vpack.c.b16 %v950, %v946
    %v1239 = vpack.c.b16 %v951, %v947
    %v1240 = vpack.c.b16 %v952, %v948
    %v1241 = vpack.c.b16 %v957, %v953
    %v1242 = vpack.c.b16 %v958, %v954
    %v1243 = vpack.c.b16 %v959, %v955
    %v1244 = vpack.c.b16 %v960, %v956
    %v1245 = vpack.c.b16 %v965, %v961
    %v1246 = vpack.c.b16 %v966, %v962
    %v1247 = vpack.c.b16 %v967, %v963
    %v1248 = vpack.c.b16 %v968, %v964
    %v1249 = vpack.c.b16 %v973, %v969
    %v1250 = vpack.c.b16 %v974, %v970
    %v1251 = vpack.c.b16 %v975, %v971
    %v1252 = vpack.c.b16 %v976, %v972
    %v1253 = vpack.c.b16 %v981, %v977
    %v1254 = vpack.c.b16 %v982, %v978
    %v1255 = vpack.c.b16 %v983, %v979
    %v1256 = vpack.c.b16 %v984, %v980
    %v1257 = vpack.c.b16 %v989, %v985
    %v1258 = vpack.c.b16 %v990, %v986
    %v1259 = vpack.c.b16 %v991, %v987
    %v1260 = vpack.c.b16 %v992, %v988
    %v1261 = vpack.c.b16 %v997, %v993
    %v1262 = vpack.c.b16 %v998, %v994
    %v1263 = vpack.c.b16 %v999, %v995
    %v1264 = vpack.c.b16 %v1000, %v996
    %v1265 = vpack.c.b16 %v1005, %v1001
    %v1266 = vpack.c.b16 %v1006, %v1002
    %v1267 = vpack.c.b16 %v1007, %v1003
    %v1268 = vpack.c.b16 %v1008, %v1004
    %v1269 = vpack.c.b16 %v1013, %v1009
    %v1270 = vpack.c.b16 %v1014, %v1010
    %v1271 = vpack.c.b16 %v1015, %v1011
    %v1272 = vpack.c.b16 %v1016, %v1012
    %v1273 = vpack.c.b16 %v1021, %v1017
    %v1274 = vpack.c.b16 %v1022, %v1018
    %v1275 = vpack.c.b16 %v1023, %v1019
    %v1276 = vpack.c.b16 %v1024, %v1020
    %v1277 = vpack.c.b16 %v1029, %v1025
    %v1278 = vpack.c.b16 %v1030, %v1026
    %v1279 = vpack.c.b16 %v1031, %v1027
    %v1280 = vpack.c.b16 %v1032, %v1028
    %v1281 = vpack.c.b16 %v1037, %v1033
    %v1282 = vpack.c.b16 %v1038, %v1034
    %v1283 = vpack.c.b16 %v1039, %v1035
    %v1284 = vpack.c.b16 %v1040, %v1036
    %v1285 = vpack.c.b16 %v1045, %v1041
    %v1286 = vpack.c.b16 %v1046, %v1042
    %v1287 = vpack.c.b16 %v1047, %v1043
    %v1288 = vpack.c.b16 %v1048, %v1044
    %v1289 = vpack.c.b16 %v1053, %v1049
    %v1290 = vpack.c.b16 %v1054, %v1050
    %v1291 = vpack.c.b16 %v1055, %v1051
    %v1292 = vpack.c.b16 %v1056, %v1052
    %v1293 = vpack.c.b16 %v1061, %v1057
    %v1294 = vpack.c.b16 %v1062, %v1058
    %v1295 = vpack.c.b16 %v1063, %v1059
    %v1296 = vpack.c.b16 %v1064, %v1060
    %v1297 = vpack.c.b16 %v1069, %v1065
    %v1298 = vpack.c.b16 %v1070, %v1066
    %v1299 = vpack.c.b16 %v1071, %v1067
    %v1300 = vpack.c.b16 %v1072, %v1068
    %v1301 = vpack.c.b16 %v1077, %v1073
    %v1302 = vpack.c.b16 %v1078, %v1074
    %v1303 = vpack.c.b16 %v1079, %v1075
    %v1304 = vpack.c.b16 %v1080, %v1076
    %1529 = vmatprep.subr.bf16.mxu0 %v1082
    %1530 = vmatpush1.bf16.msra.mxu0 %v1081
    %1531 = vmatprep.subr.bf16.mxu0 %v1086
    %1532 = vmatpush1.bf16.msra.mxu0 %v1085
    %1533 = vmatprep.subr.bf16.mxu0 %v1090
    %1534 = vmatpush1.bf16.msra.mxu0 %v1089
    %1535 = vmatprep.subr.bf16.mxu0 %v1094
    %1536 = vmatpush1.bf16.msra.mxu0 %v1093
    %1537 = vmatprep.subr.bf16.mxu0 %v1098
    %1538 = vmatpush1.bf16.msra.mxu0 %v1097
    %1539 = vmatprep.subr.bf16.mxu0 %v1102
    %1540 = vmatpush1.bf16.msra.mxu0 %v1101
    %1541 = vmatprep.subr.bf16.mxu0 %v1106
    %1542 = vmatpush1.bf16.msra.mxu0 %v1105
    %1543 = vmatprep.subr.bf16.mxu0 %v1110
    %1544 = vmatpush1.bf16.msra.mxu0 %v1109
    %1545 = vmatprep.subr.bf16.mxu0 %v1114
    %1546 = vmatpush1.bf16.msra.mxu0 %v1113
    %1547 = vmatprep.subr.bf16.mxu0 %v1118
    %1548 = vmatpush1.bf16.msra.mxu0 %v1117
    %1549 = vmatprep.subr.bf16.mxu0 %v1122
    %1550 = vmatpush1.bf16.msra.mxu0 %v1121
    %1551 = vmatprep.subr.bf16.mxu0 %v1126
    %1552 = vmatpush1.bf16.msra.mxu0 %v1125
    %1553 = vmatprep.subr.bf16.mxu0 %v1130
    %1554 = vmatpush1.bf16.msra.mxu0 %v1129
    %1555 = vmatprep.subr.bf16.mxu0 %v1134
    %1556 = vmatpush1.bf16.msra.mxu0 %v1133
    %1557 = vmatprep.subr.bf16.mxu0 %v1138
    %1558 = vmatpush1.bf16.msra.mxu0 %v1137
    %1559 = vmatprep.subr.bf16.mxu0 %v1142
    %1560 = vmatpush1.bf16.msra.mxu0 %v1141
    %1561 = vmatprep.mubr.bf16.mxu0 %v396
    %1562 = vmatmul.mubr.bf16.gmra.mrb[0].mxu0 %v395
    %v1563 = vpop.f32.mrb[0].mxu0
    %v1564 = vadd.f32 0.0, %v1563
    %v1565 = vpop.f32.mrb[0].mxu0
    %v1566 = vadd.f32 0.0, %v1565
    %v1567 = vpop.f32.mrb[0].mxu0
    %v1568 = vadd.f32 0.0, %v1567
    %v1569 = vpop.f32.mrb[0].mxu0
    %v1570 = vadd.f32 0.0, %v1569
    %1571 = vdwg.mxu0
    %1572 = vmatprep.subr.bf16.mxu0 %v1146
    %1573 = vmatpush1.bf16.msra.mxu0 %v1145
    %1574 = vmatprep.subr.bf16.mxu0 %v1150
    %1575 = vmatpush1.bf16.msra.mxu0 %v1149
    %1576 = vmatprep.subr.bf16.mxu0 %v1154
    %1577 = vmatpush1.bf16.msra.mxu0 %v1153
    %1578 = vmatprep.subr.bf16.mxu0 %v1158
    %1579 = vmatpush1.bf16.msra.mxu0 %v1157
    %1580 = vmatprep.subr.bf16.mxu0 %v1162
    %1581 = vmatpush1.bf16.msra.mxu0 %v1161
    %1582 = vmatprep.subr.bf16.mxu0 %v1166
    %1583 = vmatpush1.bf16.msra.mxu0 %v1165
    %1584 = vmatprep.subr.bf16.mxu0 %v1170
    %1585 = vmatpush1.bf16.msra.mxu0 %v1169
    %1586 = vmatprep.subr.bf16.mxu0 %v1174
    %1587 = vmatpush1.bf16.msra.mxu0 %v1173
    %1588 = vmatprep.subr.bf16.mxu0 %v1178
    %1589 = vmatpush1.bf16.msra.mxu0 %v1177
    %1590 = vmatprep.subr.bf16.mxu0 %v1182
    %1591 = vmatpush1.bf16.msra.mxu0 %v1181
    %1592 = vmatprep.subr.bf16.mxu0 %v1186
    %1593 = vmatpush1.bf16.msra.mxu0 %v1185
    %1594 = vmatprep.subr.bf16.mxu0 %v1190
    %1595 = vmatpush1.bf16.msra.mxu0 %v1189
    %1596 = vmatprep.subr.bf16.mxu0 %v1194
    %1597 = vmatpush1.bf16.msra.mxu0 %v1193
    %1598 = vmatprep.subr.bf16.mxu0 %v1198
    %1599 = vmatpush1.bf16.msra.mxu0 %v1197
    %1600 = vmatprep.subr.bf16.mxu0 %v1202
    %1601 = vmatpush1.bf16.msra.mxu0 %v1201
    %1602 = vmatprep.subr.bf16.mxu0 %v1206
    %1603 = vmatpush1.bf16.msra.mxu0 %v1205
    %1604 = vmatprep.mubr.bf16.mxu0 %v398
    %1605 = vmatmul.mubr.bf16.gmra.mrb[0].mxu0 %v397
    %v1606 = vpop.f32.mrb[0].mxu0
    %v1607 = vadd.f32 %v1564, %v1606
    %v1608 = vpop.f32.mrb[0].mxu0
    %v1609 = vadd.f32 %v1566, %v1608
    %v1610 = vpop.f32.mrb[0].mxu0
    %v1611 = vadd.f32 %v1568, %v1610
    %v1612 = vpop.f32.mrb[0].mxu0
    %v1613 = vadd.f32 %v1570, %v1612
    %1614 = vdwg.mxu0
    %1615 = vmatprep.subr.bf16.mxu0 %v1210
    %1616 = vmatpush1.bf16.msra.mxu0 %v1209
    %1617 = vmatprep.subr.bf16.mxu0 %v1214
    %1618 = vmatpush1.bf16.msra.mxu0 %v1213
    %1619 = vmatprep.subr.bf16.mxu0 %v1218
    %1620 = vmatpush1.bf16.msra.mxu0 %v1217
    %1621 = vmatprep.subr.bf16.mxu0 %v1222
    %1622 = vmatpush1.bf16.msra.mxu0 %v1221
    %1623 = vmatprep.subr.bf16.mxu0 %v1226
    %1624 = vmatpush1.bf16.msra.mxu0 %v1225
    %1625 = vmatprep.subr.bf16.mxu0 %v1230
    %1626 = vmatpush1.bf16.msra.mxu0 %v1229
    %1627 = vmatprep.subr.bf16.mxu0 %v1234
    %1628 = vmatpush1.bf16.msra.mxu0 %v1233
    %1629 = vmatprep.subr.bf16.mxu0 %v1238
    %1630 = vmatpush1.bf16.msra.mxu0 %v1237
    %1631 = vmatprep.subr.bf16.mxu0 %v1242
    %1632 = vmatpush1.bf16.msra.mxu0 %v1241
    %1633 = vmatprep.subr.bf16.mxu0 %v1246
    %1634 = vmatpush1.bf16.msra.mxu0 %v1245
    %1635 = vmatprep.subr.bf16.mxu0 %v1250
    %1636 = vmatpush1.bf16.msra.mxu0 %v1249
    %1637 = vmatprep.subr.bf16.mxu0 %v1254
    %1638 = vmatpush1.bf16.msra.mxu0 %v1253
    %1639 = vmatprep.subr.bf16.mxu0 %v1258
    %1640 = vmatpush1.bf16.msra.mxu0 %v1257
    %1641 = vmatprep.subr.bf16.mxu0 %v1262
    %1642 = vmatpush1.bf16.msra.mxu0 %v1261
    %1643 = vmatprep.subr.bf16.mxu0 %v1266
    %1644 = vmatpush1.bf16.msra.mxu0 %v1265
    %1645 = vmatprep.subr.bf16.mxu0 %v1270
    %1646 = vmatpush1.bf16.msra.mxu0 %v1269
    %1647 = vmatprep.mubr.bf16.mxu0 %v400
    %1648 = vmatmul.mubr.bf16.gmra.mrb[0].mxu0 %v399
    %v1649 = vpop.f32.mrb[0].mxu0
    %v1650 = vadd.f32 %v1607, %v1649
    %v1651 = vpop.f32.mrb[0].mxu0
    %v1652 = vadd.f32 %v1609, %v1651
    %v1653 = vpop.f32.mrb[0].mxu0
    %v1654 = vadd.f32 %v1611, %v1653
    %v1655 = vpop.f32.mrb[0].mxu0
    %v1656 = vadd.f32 %v1613, %v1655
    %1657 = vdwg.mxu0
    %1658 = vmatprep.subr.bf16.mxu0 %v1274
    %1659 = vmatpush1.bf16.msra.mxu0 %v1273
    %1660 = vmatprep.subr.bf16.mxu0 %v1278
    %1661 = vmatpush1.bf16.msra.mxu0 %v1277
    %1662 = vmatprep.subr.bf16.mxu0 %v1282
    %1663 = vmatpush1.bf16.msra.mxu0 %v1281
    %1664 = vmatprep.subr.bf16.mxu0 %v1286
    %1665 = vmatpush1.bf16.msra.mxu0 %v1285
    %1666 = vmatprep.subr.bf16.mxu0 %v1290
    %1667 = vmatpush1.bf16.msra.mxu0 %v1289
    %1668 = vmatprep.subr.bf16.mxu0 %v1294
    %1669 = vmatpush1.bf16.msra.mxu0 %v1293
    %1670 = vmatprep.subr.bf16.mxu0 %v1298
    %1671 = vmatpush1.bf16.msra.mxu0 %v1297
    %1672 = vmatprep.subr.bf16.mxu0 %v1302
    %1673 = vmatpush1.bf16.msra.mxu0 %v1301
    %1674 = vmatprep.subr.bf16.mxu0 0
    %1675 = vmatpush1.bf16.msra.mxu0 0
    %1676 = vmatprep.subr.bf16.mxu0 0
    %1677 = vmatpush1.bf16.msra.mxu0 0
    %1678 = vmatprep.subr.bf16.mxu0 0
    %1679 = vmatpush1.bf16.msra.mxu0 0
    %1680 = vmatprep.subr.bf16.mxu0 0
    %1681 = vmatpush1.bf16.msra.mxu0 0
    %1682 = vmatprep.subr.bf16.mxu0 0
    %1683 = vmatpush1.bf16.msra.mxu0 0
    %1684 = vmatprep.subr.bf16.mxu0 0
    %1685 = vmatpush1.bf16.msra.mxu0 0
    %1686 = vmatprep.subr.bf16.mxu0 0
    %1687 = vmatpush1.bf16.msra.mxu0 0
    %1688 = vmatprep.subr.bf16.mxu0 0
    %1689 = vmatpush1.bf16.msra.mxu0 0
    %1690 = vmatprep.mubr.bf16.mxu0 0
    %1691 = vmatmul.mubr.bf16.gmra.mrb[0].mxu0 %v401
    %v1692 = vpop.f32.mrb[0].mxu0
    %v1693 = vadd.f32 %v1650, %v1692
    %v1694 = vpop.f32.mrb[0].mxu0
    %v1695 = vadd.f32 %v1652, %v1694
    %v1696 = vpop.f32.mrb[0].mxu0
    %v1697 = vadd.f32 %v1654, %v1696
    %v1698 = vpop.f32.mrb[0].mxu0
    %v1699 = vadd.f32 %v1656, %v1698
    %1700 = vdwg.mxu0
    %1701 = vmatprep.subr.bf16.mxu0 %v1084
    %1702 = vmatpush1.bf16.msra.mxu0 %v1083
    %1703 = vmatprep.subr.bf16.mxu0 %v1088
    %1704 = vmatpush1.bf16.msra.mxu0 %v1087
    %1705 = vmatprep.subr.bf16.mxu0 %v1092
    %1706 = vmatpush1.bf16.msra.mxu0 %v1091
    %1707 = vmatprep.subr.bf16.mxu0 %v1096
    %1708 = vmatpush1.bf16.msra.mxu0 %v1095
    %1709 = vmatprep.subr.bf16.mxu0 %v1100
    %1710 = vmatpush1.bf16.msra.mxu0 %v1099
    %1711 = vmatprep.subr.bf16.mxu0 %v1104
    %1712 = vmatpush1.bf16.msra.mxu0 %v1103
    %1713 = vmatprep.subr.bf16.mxu0 %v1108
    %1714 = vmatpush1.bf16.msra.mxu0 %v1107
    %1715 = vmatprep.subr.bf16.mxu0 %v1112
    %1716 = vmatpush1.bf16.msra.mxu0 %v1111
    %1717 = vmatprep.subr.bf16.mxu0 %v1116
    %1718 = vmatpush1.bf16.msra.mxu0 %v1115
    %1719 = vmatprep.subr.bf16.mxu0 %v1120
    %1720 = vmatpush1.bf16.msra.mxu0 %v1119
    %1721 = vmatprep.subr.bf16.mxu0 %v1124
    %1722 = vmatpush1.bf16.msra.mxu0 %v1123
    %1723 = vmatprep.subr.bf16.mxu0 %v1128
    %1724 = vmatpush1.bf16.msra.mxu0 %v1127
    %1725 = vmatprep.subr.bf16.mxu0 %v1132
    %1726 = vmatpush1.bf16.msra.mxu0 %v1131
    %1727 = vmatprep.subr.bf16.mxu0 %v1136
    %1728 = vmatpush1.bf16.msra.mxu0 %v1135
    %1729 = vmatprep.subr.bf16.mxu0 %v1140
    %1730 = vmatpush1.bf16.msra.mxu0 %v1139
    %1731 = vmatprep.subr.bf16.mxu0 %v1144
    %1732 = vmatpush1.bf16.msra.mxu0 %v1143
    %1733 = vmatprep.mubr.bf16.mxu0 %v396
    %1734 = vmatmul.mubr.bf16.gmra.mrb[0].mxu0 %v395
    %v1735 = vpop.f32.mrb[0].mxu0
    %v1736 = vadd.f32 0.0, %v1735
    %v1737 = vpop.f32.mrb[0].mxu0
    %v1738 = vadd.f32 0.0, %v1737
    %v1739 = vpop.f32.mrb[0].mxu0
    %v1740 = vadd.f32 0.0, %v1739
    %v1741 = vpop.f32.mrb[0].mxu0
    %v1742 = vadd.f32 0.0, %v1741
    %1743 = vdwg.mxu0
    %1744 = vmatprep.subr.bf16.mxu0 %v1148
    %1745 = vmatpush1.bf16.msra.mxu0 %v1147
    %1746 = vmatprep.subr.bf16.mxu0 %v1152
    %1747 = vmatpush1.bf16.msra.mxu0 %v1151
    %1748 = vmatprep.subr.bf16.mxu0 %v1156
    %1749 = vmatpush1.bf16.msra.mxu0 %v1155
    %1750 = vmatprep.subr.bf16.mxu0 %v1160
    %1751 = vmatpush1.bf16.msra.mxu0 %v1159
    %1752 = vmatprep.subr.bf16.mxu0 %v1164
    %1753 = vmatpush1.bf16.msra.mxu0 %v1163
    %1754 = vmatprep.subr.bf16.mxu0 %v1168
    %1755 = vmatpush1.bf16.msra.mxu0 %v1167
    %1756 = vmatprep.subr.bf16.mxu0 %v1172
    %1757 = vmatpush1.bf16.msra.mxu0 %v1171
    %1758 = vmatprep.subr.bf16.mxu0 %v1176
    %1759 = vmatpush1.bf16.msra.mxu0 %v1175
    %1760 = vmatprep.subr.bf16.mxu0 %v1180
    %1761 = vmatpush1.bf16.msra.mxu0 %v1179
    %1762 = vmatprep.subr.bf16.mxu0 %v1184
    %1763 = vmatpush1.bf16.msra.mxu0 %v1183
    %1764 = vmatprep.subr.bf16.mxu0 %v1188
    %1765 = vmatpush1.bf16.msra.mxu0 %v1187
    %1766 = vmatprep.subr.bf16.mxu0 %v1192
    %1767 = vmatpush1.bf16.msra.mxu0 %v1191
    %1768 = vmatprep.subr.bf16.mxu0 %v1196
    %1769 = vmatpush1.bf16.msra.mxu0 %v1195
    %1770 = vmatprep.subr.bf16.mxu0 %v1200
    %1771 = vmatpush1.bf16.msra.mxu0 %v1199
    %1772 = vmatprep.subr.bf16.mxu0 %v1204
    %1773 = vmatpush1.bf16.msra.mxu0 %v1203
    %1774 = vmatprep.subr.bf16.mxu0 %v1208
    %1775 = vmatpush1.bf16.msra.mxu0 %v1207
    %1776 = vmatprep.mubr.bf16.mxu0 %v398
    %1777 = vmatmul.mubr.bf16.gmra.mrb[0].mxu0 %v397
    %v1778 = vpop.f32.mrb[0].mxu0
    %v1779 = vadd.f32 %v1736, %v1778
    %v1780 = vpop.f32.mrb[0].mxu0
    %v1781 = vadd.f32 %v1738, %v1780
    %v1782 = vpop.f32.mrb[0].mxu0
    %v1783 = vadd.f32 %v1740, %v1782
    %v1784 = vpop.f32.mrb[0].mxu0
    %v1785 = vadd.f32 %v1742, %v1784
    %1786 = vdwg.mxu0
    %1787 = vmatprep.subr.bf16.mxu0 %v1212
    %1788 = vmatpush1.bf16.msra.mxu0 %v1211
    %1789 = vmatprep.subr.bf16.mxu0 %v1216
    %1790 = vmatpush1.bf16.msra.mxu0 %v1215
    %1791 = vmatprep.subr.bf16.mxu0 %v1220
    %1792 = vmatpush1.bf16.msra.mxu0 %v1219
    %1793 = vmatprep.subr.bf16.mxu0 %v1224
    %1794 = vmatpush1.bf16.msra.mxu0 %v1223
    %1795 = vmatprep.subr.bf16.mxu0 %v1228
    %1796 = vmatpush1.bf16.msra.mxu0 %v1227
    %1797 = vmatprep.subr.bf16.mxu0 %v1232
    %1798 = vmatpush1.bf16.msra.mxu0 %v1231
    %1799 = vmatprep.subr.bf16.mxu0 %v1236
    %1800 = vmatpush1.bf16.msra.mxu0 %v1235
    %1801 = vmatprep.subr.bf16.mxu0 %v1240
    %1802 = vmatpush1.bf16.msra.mxu0 %v1239
    %1803 = vmatprep.subr.bf16.mxu0 %v1244
    %1804 = vmatpush1.bf16.msra.mxu0 %v1243
    %1805 = vmatprep.subr.bf16.mxu0 %v1248
    %1806 = vmatpush1.bf16.msra.mxu0 %v1247
    %1807 = vmatprep.subr.bf16.mxu0 %v1252
    %1808 = vmatpush1.bf16.msra.mxu0 %v1251
    %1809 = vmatprep.subr.bf16.mxu0 %v1256
    %1810 = vmatpush1.bf16.msra.mxu0 %v1255
    %1811 = vmatprep.subr.bf16.mxu0 %v1260
    %1812 = vmatpush1.bf16.msra.mxu0 %v1259
    %1813 = vmatprep.subr.bf16.mxu0 %v1264
    %1814 = vmatpush1.bf16.msra.mxu0 %v1263
    %1815 = vmatprep.subr.bf16.mxu0 %v1268
    %1816 = vmatpush1.bf16.msra.mxu0 %v1267
    %1817 = vmatprep.subr.bf16.mxu0 %v1272
    %1818 = vmatpush1.bf16.msra.mxu0 %v1271
    %1819 = vmatprep.mubr.bf16.mxu0 %v400
    %1820 = vmatmul.mubr.bf16.gmra.mrb[0].mxu0 %v399
    %v1821 = vpop.f32.mrb[0].mxu0
    %v1822 = vadd.f32 %v1779, %v1821
    %v1823 = vpop.f32.mrb[0].mxu0
    %v1824 = vadd.f32 %v1781, %v1823
    %v1825 = vpop.f32.mrb[0].mxu0
    %v1826 = vadd.f32 %v1783, %v1825
    %v1827 = vpop.f32.mrb[0].mxu0
    %v1828 = vadd.f32 %v1785, %v1827
    %1829 = vdwg.mxu0
    %1830 = vmatprep.subr.bf16.mxu0 %v1276
    %1831 = vmatpush1.bf16.msra.mxu0 %v1275
    %1832 = vmatprep.subr.bf16.mxu0 %v1280
    %1833 = vmatpush1.bf16.msra.mxu0 %v1279
    %1834 = vmatprep.subr.bf16.mxu0 %v1284
    %1835 = vmatpush1.bf16.msra.mxu0 %v1283
    %1836 = vmatprep.subr.bf16.mxu0 %v1288
    %1837 = vmatpush1.bf16.msra.mxu0 %v1287
    %1838 = vmatprep.subr.bf16.mxu0 %v1292
    %1839 = vmatpush1.bf16.msra.mxu0 %v1291
    %1840 = vmatprep.subr.bf16.mxu0 %v1296
    %1841 = vmatpush1.bf16.msra.mxu0 %v1295
    %1842 = vmatprep.subr.bf16.mxu0 %v1300
    %1843 = vmatpush1.bf16.msra.mxu0 %v1299
    %1844 = vmatprep.subr.bf16.mxu0 %v1304
    %1845 = vmatpush1.bf16.msra.mxu0 %v1303
    %1846 = vmatprep.subr.bf16.mxu0 0
    %1847 = vmatpush1.bf16.msra.mxu0 0
    %1848 = vmatprep.subr.bf16.mxu0 0
    %1849 = vmatpush1.bf16.msra.mxu0 0
    %1850 = vmatprep.subr.bf16.mxu0 0
    %1851 = vmatpush1.bf16.msra.mxu0 0
    %1852 = vmatprep.subr.bf16.mxu0 0
    %1853 = vmatpush1.bf16.msra.mxu0 0
    %1854 = vmatprep.subr.bf16.mxu0 0
    %1855 = vmatpush1.bf16.msra.mxu0 0
    %1856 = vmatprep.subr.bf16.mxu0 0
    %1857 = vmatpush1.bf16.msra.mxu0 0
    %1858 = vmatprep.subr.bf16.mxu0 0
    %1859 = vmatpush1.bf16.msra.mxu0 0
    %1860 = vmatprep.subr.bf16.mxu0 0
    %1861 = vmatpush1.bf16.msra.mxu0 0
    %1862 = vmatprep.mubr.bf16.mxu0 0
    %1863 = vmatmul.mubr.bf16.gmra.mrb[0].mxu0 %v401
    %v1864 = vpop.f32.mrb[0].mxu0
    %v1865 = vadd.f32 %v1822, %v1864
    %v1866 = vpop.f32.mrb[0].mxu0
    %v1867 = vadd.f32 %v1824, %v1866
    %v1868 = vpop.f32.mrb[0].mxu0
    %v1869 = vadd.f32 %v1826, %v1868
    %v1870 = vpop.f32.mrb[0].mxu0
    %v1871 = vadd.f32 %v1828, %v1870
    %1872 = vdwg.mxu0
    %v1873 = vpack.c.bf16 %v1697, %v1693
    %v1874 = vpack.c.bf16 %v1699, %v1695
    %v1875 = vpack.c.bf16 %v1869, %v1865
    %v1876 = vpack.c.bf16 %v1871, %v1867
    %v1877 = vld [vmem:[%s2] sm:$0xf]
    %v1880 = vunpack.c.l.s4 1966171168
    %v1881 = vunpack.c.0.s8 %v1880
    %v1882 = vlaneseq
    %v1883 = vshrl.u32 %v1882, 7
    %v1884 = vsub.s32 %v1881, %v1883
    %v1885 = vrot.slane %v1877, %v1884
    %v1886 = vcombine.high %v1885, %v1885
    %v1888 = vunpack.c.l.s4 1966171168
    %v1889 = vunpack.c.0.s8 %v1888
    %v1890 = vlaneseq
    %v1891 = vshrl.u32 %v1890, 7
    %v1892 = vsub.s32 %v1889, %v1891
    %v1893 = vrot.slane %v1885, %v1892
    %v1895 = vunpack.c.l.s4 1966171168
    %v1896 = vunpack.c.0.s8 %v1895
    %v1897 = vlaneseq
    %v1898 = vshrl.u32 %v1897, 7
    %v1899 = vsub.s32 %v1896, %v1898
    %v1900 = vrot.slane %v1886, %v1899
    %v1901 = vcombine.high %v1893, %v1893
    %v1902 = vcombine.high %v1900, %v1900
    %v1904 = vpack.i.b16 %v1893, %v1893
    %v1906 = vlaneseq
    %v1907 = vshrl.u32 %v1906, 7
    %v1908 = vsub.s32 0, %v1907
    %v1909 = vrot.slane %v1904, %v1908
    %v1911 = vpack.i.b16 %v1900, %v1900
    %v1913 = vlaneseq
    %v1914 = vshrl.u32 %v1913, 7
    %v1915 = vsub.s32 0, %v1914
    %v1916 = vrot.slane %v1911, %v1915
    %v1918 = vpack.i.b16 %v1901, %v1901
    %v1920 = vlaneseq
    %v1921 = vshrl.u32 %v1920, 7
    %v1922 = vsub.s32 0, %v1921
    %v1923 = vrot.slane %v1918, %v1922
    %v1925 = vpack.i.b16 %v1902, %v1902
    %v1927 = vlaneseq
    %v1928 = vshrl.u32 %v1927, 7
    %v1929 = vsub.s32 0, %v1928
    %v1930 = vrot.slane %v1925, %v1929
    %v1931 = vadd.bf16 %v1873, %v1909
    %v1932 = vadd.bf16 %v1874, %v1916
    %v1933 = vadd.bf16 %v1875, %v1923
    %v1934 = vadd.bf16 %v1876, %v1930
    %v1935 = vmax.bf16 %v1931, 0
    %v1936 = vmax.bf16 %v1932, 0
    %v1937 = vmax.bf16 %v1933, 0
    %v1938 = vmax.bf16 %v1934, 0
    %v1939 = vld [vmem:[#allocation7] sm:$0xff]
    %v1940 = vld [vmem:[#allocation7 + $0x8] sm:$0xff]
    %v1941 = vld [vmem:[#allocation7 + $0x10] sm:$0xff]
    %v1942 = vld [vmem:[#allocation7 + $0x18] sm:$0xff]
    %v1943 = vld [vmem:[#allocation7 + $0x20] sm:$0xff]
    %v1944 = vld [vmem:[#allocation7 + $0x28] sm:$0xff]
    %v1945 = vld [vmem:[#allocation7 + $0x30] sm:$0xff]
    %v1946 = vld [vmem:[#allocation7 + $0x38] sm:$0xff]
    %v1947 = vld [vmem:[#allocation7 + $0x40] sm:$0xff]
    %v1948 = vld [vmem:[#allocation7 + $0x48] sm:$0xff]
    %v1949 = vld [vmem:[#allocation7 + $0x50] sm:$0xff]
    %v1950 = vld [vmem:[#allocation7 + $0x58] sm:$0xff]
    %v1951 = vld [vmem:[#allocation7 + $0x60] sm:$0xff]
    %v1952 = vld [vmem:[#allocation7 + $0x68] sm:$0xff]
    %v1953 = vld [vmem:[#allocation7 + $0x70] sm:$0xff]
    %v1954 = vld [vmem:[#allocation7 + $0x78] sm:$0xff]
    %v1955 = vld [vmem:[#allocation7 + $0x80] sm:$0xff]
    %v1956 = vld [vmem:[#allocation7 + $0x88] sm:$0xff]
    %v1957 = vld [vmem:[#allocation7 + $0x90] sm:$0xff]
    %v1958 = vld [vmem:[#allocation7 + $0x98] sm:$0xff]
    %v1959 = vld [vmem:[#allocation7 + $0xa0] sm:$0xff]
    %v1960 = vld [vmem:[#allocation7 + $0xa8] sm:$0xff]
    %v1961 = vld [vmem:[#allocation7 + $0xb0] sm:$0xff]
    %v1962 = vld [vmem:[#allocation7 + $0xb8] sm:$0xff]
    %v1963 = vld [vmem:[#allocation7 + $0xc0] sm:$0xff]
    %v1964 = vld [vmem:[#allocation7 + $0xc8] sm:$0xff]
    %v1965 = vld [vmem:[#allocation7 + $0xd0] sm:$0xff]
    %v1966 = vld [vmem:[#allocation7 + $0xd8] sm:$0xff]
    %v1967 = vld [vmem:[#allocation7 + $0xe0] sm:$0xff]
    %v1968 = vld [vmem:[#allocation7 + $0xe8] sm:$0xff]
    %v1969 = vld [vmem:[#allocation7 + $0xf0] sm:$0xff]
    %v1970 = vld [vmem:[#allocation7 + $0xf8] sm:$0xff]
    %v1971 = vld [vmem:[#allocation7 + $0x100] sm:$0xff]
    %v1972 = vld [vmem:[#allocation7 + $0x108] sm:$0xff]
    %v1973 = vld [vmem:[#allocation7 + $0x110] sm:$0xff]
    %v1974 = vld [vmem:[#allocation7 + $0x118] sm:$0xff]
    %v1975 = vld [vmem:[#allocation7 + $0x120] sm:$0xff]
    %v1976 = vld [vmem:[#allocation7 + $0x128] sm:$0xff]
    %v1977 = vld [vmem:[#allocation7 + $0x130] sm:$0xff]
    %v1978 = vld [vmem:[#allocation7 + $0x138] sm:$0xff]
    %v1979 = vld [vmem:[#allocation7 + $0x140] sm:$0xff]
    %v1980 = vld [vmem:[#allocation7 + $0x148] sm:$0xff]
    %v1981 = vld [vmem:[#allocation7 + $0x150] sm:$0xff]
    %v1982 = vld [vmem:[#allocation7 + $0x158] sm:$0xff]
    %v1983 = vld [vmem:[#allocation7 + $0x160] sm:$0xff]
    %v1984 = vld [vmem:[#allocation7 + $0x168] sm:$0xff]
    %v1985 = vld [vmem:[#allocation7 + $0x170] sm:$0xff]
    %v1986 = vld [vmem:[#allocation7 + $0x178] sm:$0xff]
    %v1987 = vld [vmem:[#allocation7 + $0x180] sm:$0xff]
    %v1988 = vld [vmem:[#allocation7 + $0x188] sm:$0xff]
    %v1989 = vld [vmem:[#allocation7 + $0x190] sm:$0xff]
    %v1990 = vld [vmem:[#allocation7 + $0x198] sm:$0xff]
    %v1991 = vld [vmem:[#allocation7 + $0x1a0] sm:$0xff]
    %v1992 = vld [vmem:[#allocation7 + $0x1a8] sm:$0xff]
    %v1993 = vld [vmem:[#allocation7 + $0x1b0] sm:$0xff]
    %v1994 = vld [vmem:[#allocation7 + $0x1b8] sm:$0xff]
    %v1995 = vld [vmem:[#allocation7 + $0x1c0] sm:$0xff]
    %v1996 = vld [vmem:[#allocation7 + $0x1c8] sm:$0xff]
    %v1997 = vld [vmem:[#allocation7 + $0x1d0] sm:$0xff]
    %v1998 = vld [vmem:[#allocation7 + $0x1d8] sm:$0xff]
    %v1999 = vld [vmem:[#allocation7 + $0x1e0] sm:$0xff]
    %v2000 = vld [vmem:[#allocation7 + $0x1e8] sm:$0xff]
    %v2001 = vld [vmem:[#allocation7 + $0x1f0] sm:$0xff]
    %v2002 = vld [vmem:[#allocation7 + $0x1f8] sm:$0xff]
    %v2067 = vunpack.c.l.b16 %v1939
    %v2068 = vunpack.c.h.b16 %v1939
    %v2069 = vunpack.c.l.b16 %v1940
    %v2070 = vunpack.c.h.b16 %v1940
    %v2071 = vunpack.c.l.b16 %v1941
    %v2072 = vunpack.c.h.b16 %v1941
    %v2073 = vunpack.c.l.b16 %v1942
    %v2074 = vunpack.c.h.b16 %v1942
    %v2075 = vunpack.c.l.b16 %v1943
    %v2076 = vunpack.c.h.b16 %v1943
    %v2077 = vunpack.c.l.b16 %v1944
    %v2078 = vunpack.c.h.b16 %v1944
    %v2079 = vunpack.c.l.b16 %v1945
    %v2080 = vunpack.c.h.b16 %v1945
    %v2081 = vunpack.c.l.b16 %v1946
    %v2082 = vunpack.c.h.b16 %v1946
    %v2083 = vunpack.c.l.b16 %v1947
    %v2084 = vunpack.c.h.b16 %v1947
    %v2085 = vunpack.c.l.b16 %v1948
    %v2086 = vunpack.c.h.b16 %v1948
    %v2087 = vunpack.c.l.b16 %v1949
    %v2088 = vunpack.c.h.b16 %v1949
    %v2089 = vunpack.c.l.b16 %v1950
    %v2090 = vunpack.c.h.b16 %v1950
    %v2091 = vunpack.c.l.b16 %v1951
    %v2092 = vunpack.c.h.b16 %v1951
    %v2093 = vunpack.c.l.b16 %v1952
    %v2094 = vunpack.c.h.b16 %v1952
    %v2095 = vunpack.c.l.b16 %v1953
    %v2096 = vunpack.c.h.b16 %v1953
    %v2097 = vunpack.c.l.b16 %v1954
    %v2098 = vunpack.c.h.b16 %v1954
    %v2099 = vunpack.c.l.b16 %v1955
    %v2100 = vunpack.c.h.b16 %v1955
    %v2101 = vunpack.c.l.b16 %v1956
    %v2102 = vunpack.c.h.b16 %v1956
    %v2103 = vunpack.c.l.b16 %v1957
    %v2104 = vunpack.c.h.b16 %v1957
    %v2105 = vunpack.c.l.b16 %v1958
    %v2106 = vunpack.c.h.b16 %v1958
    %v2107 = vunpack.c.l.b16 %v1959
    %v2108 = vunpack.c.h.b16 %v1959
    %v2109 = vunpack.c.l.b16 %v1960
    %v2110 = vunpack.c.h.b16 %v1960
    %v2111 = vunpack.c.l.b16 %v1961
    %v2112 = vunpack.c.h.b16 %v1961
    %v2113 = vunpack.c.l.b16 %v1962
    %v2114 = vunpack.c.h.b16 %v1962
    %v2115 = vunpack.c.l.b16 %v1963
    %v2116 = vunpack.c.h.b16 %v1963
    %v2117 = vunpack.c.l.b16 %v1964
    %v2118 = vunpack.c.h.b16 %v1964
    %v2119 = vunpack.c.l.b16 %v1965
    %v2120 = vunpack.c.h.b16 %v1965
    %v2121 = vunpack.c.l.b16 %v1966
    %v2122 = vunpack.c.h.b16 %v1966
    %v2123 = vunpack.c.l.b16 %v1967
    %v2124 = vunpack.c.h.b16 %v1967
    %v2125 = vunpack.c.l.b16 %v1968
    %v2126 = vunpack.c.h.b16 %v1968
    %v2127 = vunpack.c.l.b16 %v1969
    %v2128 = vunpack.c.h.b16 %v1969
    %v2129 = vunpack.c.l.b16 %v1970
    %v2130 = vunpack.c.h.b16 %v1970
    %v2131 = vunpack.c.l.b16 %v1971
    %v2132 = vunpack.c.h.b16 %v1971
    %v2133 = vunpack.c.l.b16 %v1972
    %v2134 = vunpack.c.h.b16 %v1972
    %v2135 = vunpack.c.l.b16 %v1973
    %v2136 = vunpack.c.h.b16 %v1973
    %v2137 = vunpack.c.l.b16 %v1974
    %v2138 = vunpack.c.h.b16 %v1974
    %v2139 = vunpack.c.l.b16 %v1975
    %v2140 = vunpack.c.h.b16 %v1975
    %v2141 = vunpack.c.l.b16 %v1976
    %v2142 = vunpack.c.h.b16 %v1976
    %v2143 = vunpack.c.l.b16 %v1977
    %v2144 = vunpack.c.h.b16 %v1977
    %v2145 = vunpack.c.l.b16 %v1978
    %v2146 = vunpack.c.h.b16 %v1978
    %v2147 = vunpack.c.l.b16 %v1979
    %v2148 = vunpack.c.h.b16 %v1979
    %v2149 = vunpack.c.l.b16 %v1980
    %v2150 = vunpack.c.h.b16 %v1980
    %v2151 = vunpack.c.l.b16 %v1981
    %v2152 = vunpack.c.h.b16 %v1981
    %v2153 = vunpack.c.l.b16 %v1982
    %v2154 = vunpack.c.h.b16 %v1982
    %v2155 = vunpack.c.l.b16 %v1983
    %v2156 = vunpack.c.h.b16 %v1983
    %v2157 = vunpack.c.l.b16 %v1984
    %v2158 = vunpack.c.h.b16 %v1984
    %v2159 = vunpack.c.l.b16 %v1985
    %v2160 = vunpack.c.h.b16 %v1985
    %v2161 = vunpack.c.l.b16 %v1986
    %v2162 = vunpack.c.h.b16 %v1986
    %v2163 = vunpack.c.l.b16 %v1987
    %v2164 = vunpack.c.h.b16 %v1987
    %v2165 = vunpack.c.l.b16 %v1988
    %v2166 = vunpack.c.h.b16 %v1988
    %v2167 = vunpack.c.l.b16 %v1989
    %v2168 = vunpack.c.h.b16 %v1989
    %v2169 = vunpack.c.l.b16 %v1990
    %v2170 = vunpack.c.h.b16 %v1990
    %v2171 = vunpack.c.l.b16 %v1991
    %v2172 = vunpack.c.h.b16 %v1991
    %v2173 = vunpack.c.l.b16 %v1992
    %v2174 = vunpack.c.h.b16 %v1992
    %v2175 = vunpack.c.l.b16 %v1993
    %v2176 = vunpack.c.h.b16 %v1993
    %v2177 = vunpack.c.l.b16 %v1994
    %v2178 = vunpack.c.h.b16 %v1994
    %v2179 = vunpack.c.l.b16 %v1995
    %v2180 = vunpack.c.h.b16 %v1995
    %v2181 = vunpack.c.l.b16 %v1996
    %v2182 = vunpack.c.h.b16 %v1996
    %v2183 = vunpack.c.l.b16 %v1997
    %v2184 = vunpack.c.h.b16 %v1997
    %v2185 = vunpack.c.l.b16 %v1998
    %v2186 = vunpack.c.h.b16 %v1998
    %v2187 = vunpack.c.l.b16 %v1999
    %v2188 = vunpack.c.h.b16 %v1999
    %v2189 = vunpack.c.l.b16 %v2000
    %v2190 = vunpack.c.h.b16 %v2000
    %v2191 = vunpack.c.l.b16 %v2001
    %v2192 = vunpack.c.h.b16 %v2001
    %v2193 = vunpack.c.l.b16 %v2002
    %v2194 = vunpack.c.h.b16 %v2002
    %v2195 = vpack.c.b16 %v2069, %v2067
    %v2196 = vpack.c.b16 %v2070, %v2068
    %v2197 = vpack.c.b16 %v2073, %v2071
    %v2198 = vpack.c.b16 %v2074, %v2072
    %v2199 = vpack.c.b16 %v2077, %v2075
    %v2200 = vpack.c.b16 %v2078, %v2076
    %v2201 = vpack.c.b16 %v2081, %v2079
    %v2202 = vpack.c.b16 %v2082, %v2080
    %v2203 = vpack.c.b16 %v2085, %v2083
    %v2204 = vpack.c.b16 %v2086, %v2084
    %v2205 = vpack.c.b16 %v2089, %v2087
    %v2206 = vpack.c.b16 %v2090, %v2088
    %v2207 = vpack.c.b16 %v2093, %v2091
    %v2208 = vpack.c.b16 %v2094, %v2092
    %v2209 = vpack.c.b16 %v2097, %v2095
    %v2210 = vpack.c.b16 %v2098, %v2096
    %v2211 = vpack.c.b16 %v2101, %v2099
    %v2212 = vpack.c.b16 %v2102, %v2100
    %v2213 = vpack.c.b16 %v2105, %v2103
    %v2214 = vpack.c.b16 %v2106, %v2104
    %v2215 = vpack.c.b16 %v2109, %v2107
    %v2216 = vpack.c.b16 %v2110, %v2108
    %v2217 = vpack.c.b16 %v2113, %v2111
    %v2218 = vpack.c.b16 %v2114, %v2112
    %v2219 = vpack.c.b16 %v2117, %v2115
    %v2220 = vpack.c.b16 %v2118, %v2116
    %v2221 = vpack.c.b16 %v2121, %v2119
    %v2222 = vpack.c.b16 %v2122, %v2120
    %v2223 = vpack.c.b16 %v2125, %v2123
    %v2224 = vpack.c.b16 %v2126, %v2124
    %v2225 = vpack.c.b16 %v2129, %v2127
    %v2226 = vpack.c.b16 %v2130, %v2128
    %v2227 = vpack.c.b16 %v2133, %v2131
    %v2228 = vpack.c.b16 %v2134, %v2132
    %v2229 = vpack.c.b16 %v2137, %v2135
    %v2230 = vpack.c.b16 %v2138, %v2136
    %v2231 = vpack.c.b16 %v2141, %v2139
    %v2232 = vpack.c.b16 %v2142, %v2140
    %v2233 = vpack.c.b16 %v2145, %v2143
    %v2234 = vpack.c.b16 %v2146, %v2144
    %v2235 = vpack.c.b16 %v2149, %v2147
    %v2236 = vpack.c.b16 %v2150, %v2148
    %v2237 = vpack.c.b16 %v2153, %v2151
    %v2238 = vpack.c.b16 %v2154, %v2152
    %v2239 = vpack.c.b16 %v2157, %v2155
    %v2240 = vpack.c.b16 %v2158, %v2156
    %v2241 = vpack.c.b16 %v2161, %v2159
    %v2242 = vpack.c.b16 %v2162, %v2160
    %v2243 = vpack.c.b16 %v2165, %v2163
    %v2244 = vpack.c.b16 %v2166, %v2164
    %v2245 = vpack.c.b16 %v2169, %v2167
    %v2246 = vpack.c.b16 %v2170, %v2168
    %v2247 = vpack.c.b16 %v2173, %v2171
    %v2248 = vpack.c.b16 %v2174, %v2172
    %v2249 = vpack.c.b16 %v2177, %v2175
    %v2250 = vpack.c.b16 %v2178, %v2176
    %v2251 = vpack.c.b16 %v2181, %v2179
    %v2252 = vpack.c.b16 %v2182, %v2180
    %v2253 = vpack.c.b16 %v2185, %v2183
    %v2254 = vpack.c.b16 %v2186, %v2184
    %v2255 = vpack.c.b16 %v2189, %v2187
    %v2256 = vpack.c.b16 %v2190, %v2188
    %v2257 = vpack.c.b16 %v2193, %v2191
    %v2258 = vpack.c.b16 %v2194, %v2192
    %2323 = vmatprep.subr.bf16.mxu0 %v2196
    %2324 = vmatpush1.bf16.msra.mxu0 %v2195
    %2325 = vmatprep.subr.bf16.mxu0 %v2198
    %2326 = vmatpush1.bf16.msra.mxu0 %v2197
    %2327 = vmatprep.subr.bf16.mxu0 %v2200
    %2328 = vmatpush1.bf16.msra.mxu0 %v2199
    %2329 = vmatprep.subr.bf16.mxu0 %v2202
    %2330 = vmatpush1.bf16.msra.mxu0 %v2201
    %2331 = vmatprep.subr.bf16.mxu0 %v2204
    %2332 = vmatpush1.bf16.msra.mxu0 %v2203
    %2333 = vmatprep.subr.bf16.mxu0 %v2206
    %2334 = vmatpush1.bf16.msra.mxu0 %v2205
    %2335 = vmatprep.subr.bf16.mxu0 %v2208
    %2336 = vmatpush1.bf16.msra.mxu0 %v2207
    %2337 = vmatprep.subr.bf16.mxu0 %v2210
    %2338 = vmatpush1.bf16.msra.mxu0 %v2209
    %2339 = vmatprep.subr.bf16.mxu0 %v2212
    %2340 = vmatpush1.bf16.msra.mxu0 %v2211
    %2341 = vmatprep.subr.bf16.mxu0 %v2214
    %2342 = vmatpush1.bf16.msra.mxu0 %v2213
    %2343 = vmatprep.subr.bf16.mxu0 %v2216
    %2344 = vmatpush1.bf16.msra.mxu0 %v2215
    %2345 = vmatprep.subr.bf16.mxu0 %v2218
    %2346 = vmatpush1.bf16.msra.mxu0 %v2217
    %2347 = vmatprep.subr.bf16.mxu0 %v2220
    %2348 = vmatpush1.bf16.msra.mxu0 %v2219
    %2349 = vmatprep.subr.bf16.mxu0 %v2222
    %2350 = vmatpush1.bf16.msra.mxu0 %v2221
    %2351 = vmatprep.subr.bf16.mxu0 %v2224
    %2352 = vmatpush1.bf16.msra.mxu0 %v2223
    %2353 = vmatprep.subr.bf16.mxu0 %v2226
    %2354 = vmatpush1.bf16.msra.mxu0 %v2225
    %2355 = vmatprep.mubr.bf16.mxu0 %v1936
    %2356 = vmatmul.mubr.bf16.gmra.mrb[0].mxu0 %v1935
    %v2357 = vpop.f32.mrb[0].mxu0
    %v2358 = vadd.f32 0.0, %v2357
    %v2359 = vpop.f32.mrb[0].mxu0
    %v2360 = vadd.f32 0.0, %v2359
    %v2361 = vpop.f32.mrb[0].mxu0
    %v2362 = vadd.f32 0.0, %v2361
    %v2363 = vpop.f32.mrb[0].mxu0
    %v2364 = vadd.f32 0.0, %v2363
    %2365 = vdwg.mxu0
    %2366 = vmatprep.subr.bf16.mxu0 %v2228
    %2367 = vmatpush1.bf16.msra.mxu0 %v2227
    %2368 = vmatprep.subr.bf16.mxu0 %v2230
    %2369 = vmatpush1.bf16.msra.mxu0 %v2229
    %2370 = vmatprep.subr.bf16.mxu0 %v2232
    %2371 = vmatpush1.bf16.msra.mxu0 %v2231
    %2372 = vmatprep.subr.bf16.mxu0 %v2234
    %2373 = vmatpush1.bf16.msra.mxu0 %v2233
    %2374 = vmatprep.subr.bf16.mxu0 %v2236
    %2375 = vmatpush1.bf16.msra.mxu0 %v2235
    %2376 = vmatprep.subr.bf16.mxu0 %v2238
    %2377 = vmatpush1.bf16.msra.mxu0 %v2237
    %2378 = vmatprep.subr.bf16.mxu0 %v2240
    %2379 = vmatpush1.bf16.msra.mxu0 %v2239
    %2380 = vmatprep.subr.bf16.mxu0 %v2242
    %2381 = vmatpush1.bf16.msra.mxu0 %v2241
    %2382 = vmatprep.subr.bf16.mxu0 %v2244
    %2383 = vmatpush1.bf16.msra.mxu0 %v2243
    %2384 = vmatprep.subr.bf16.mxu0 %v2246
    %2385 = vmatpush1.bf16.msra.mxu0 %v2245
    %2386 = vmatprep.subr.bf16.mxu0 %v2248
    %2387 = vmatpush1.bf16.msra.mxu0 %v2247
    %2388 = vmatprep.subr.bf16.mxu0 %v2250
    %2389 = vmatpush1.bf16.msra.mxu0 %v2249
    %2390 = vmatprep.subr.bf16.mxu0 %v2252
    %2391 = vmatpush1.bf16.msra.mxu0 %v2251
    %2392 = vmatprep.subr.bf16.mxu0 %v2254
    %2393 = vmatpush1.bf16.msra.mxu0 %v2253
    %2394 = vmatprep.subr.bf16.mxu0 %v2256
    %2395 = vmatpush1.bf16.msra.mxu0 %v2255
    %2396 = vmatprep.subr.bf16.mxu0 %v2258
    %2397 = vmatpush1.bf16.msra.mxu0 %v2257
    %2398 = vmatprep.mubr.bf16.mxu0 %v1938
    %2399 = vmatmul.mubr.bf16.gmra.mrb[0].mxu0 %v1937
    %v2400 = vpop.f32.mrb[0].mxu0
    %v2401 = vadd.f32 %v2358, %v2400
    %v2402 = vpop.f32.mrb[0].mxu0
    %v2403 = vadd.f32 %v2360, %v2402
    %v2404 = vpop.f32.mrb[0].mxu0
    %v2405 = vadd.f32 %v2362, %v2404
    %v2406 = vpop.f32.mrb[0].mxu0
    %v2407 = vadd.f32 %v2364, %v2406
    %2408 = vdwg.mxu0
    %v2409 = vpack.c.bf16 %v2405, %v2401
    %v2410 = vpack.c.bf16 %v2407, %v2403
    %v2411 = vld [vmem:[%s4] sm:$0x3]
    %v2414 = vunpack.c.l.s4 1966171168
    %v2415 = vunpack.c.0.s8 %v2414
    %v2416 = vlaneseq
    %v2417 = vshrl.u32 %v2416, 7
    %v2418 = vsub.s32 %v2415, %v2417
    %v2419 = vrot.slane %v2411, %v2418
    %v2420 = vcombine.high %v2419, %v2419
    %v2422 = vunpack.c.l.s4 1966171168
    %v2423 = vunpack.c.0.s8 %v2422
    %v2424 = vlaneseq
    %v2425 = vshrl.u32 %v2424, 7
    %v2426 = vsub.s32 %v2423, %v2425
    %v2427 = vrot.slane %v2419, %v2426
    %v2429 = vunpack.c.l.s4 1966171168
    %v2430 = vunpack.c.0.s8 %v2429
    %v2431 = vlaneseq
    %v2432 = vshrl.u32 %v2431, 7
    %v2433 = vsub.s32 %v2430, %v2432
    %v2434 = vrot.slane %v2420, %v2433
    %v2436 = vpack.i.b16 %v2427, %v2427
    %v2438 = vlaneseq
    %v2439 = vshrl.u32 %v2438, 7
    %v2440 = vsub.s32 0, %v2439
    %v2441 = vrot.slane %v2436, %v2440
    %v2443 = vpack.i.b16 %v2434, %v2434
    %v2445 = vlaneseq
    %v2446 = vshrl.u32 %v2445, 7
    %v2447 = vsub.s32 0, %v2446
    %v2448 = vrot.slane %v2443, %v2447
    %v2449 = vadd.bf16 %v2409, %v2441
    %v2450 = vadd.bf16 %v2410, %v2448
    %v2451 = vmax.bf16 %v2449, 0
    %v2452 = vmax.bf16 %v2450, 0
    %v2453 = vld [vmem:[#allocation8] sm:$0xff]
    %v2454 = vld [vmem:[#allocation8 + $0x8] sm:$0xff]
    %v2455 = vld [vmem:[#allocation8 + $0x10] sm:$0xff]
    %v2456 = vld [vmem:[#allocation8 + $0x18] sm:$0xff]
    %v2457 = vld [vmem:[#allocation8 + $0x20] sm:$0xff]
    %v2458 = vld [vmem:[#allocation8 + $0x28] sm:$0xff]
    %v2459 = vld [vmem:[#allocation8 + $0x30] sm:$0xff]
    %v2460 = vld [vmem:[#allocation8 + $0x38] sm:$0xff]
    %v2461 = vld [vmem:[#allocation8 + $0x40] sm:$0xff]
    %v2462 = vld [vmem:[#allocation8 + $0x48] sm:$0xff]
    %v2463 = vld [vmem:[#allocation8 + $0x50] sm:$0xff]
    %v2464 = vld [vmem:[#allocation8 + $0x58] sm:$0xff]
    %v2465 = vld [vmem:[#allocation8 + $0x60] sm:$0xff]
    %v2466 = vld [vmem:[#allocation8 + $0x68] sm:$0xff]
    %v2467 = vld [vmem:[#allocation8 + $0x70] sm:$0xff]
    %v2468 = vld [vmem:[#allocation8 + $0x78] sm:$0xff]
    %v2469 = vld [vmem:[#allocation8 + $0x80] sm:$0xff]
    %v2470 = vld [vmem:[#allocation8 + $0x88] sm:$0xff]
    %v2471 = vld [vmem:[#allocation8 + $0x90] sm:$0xff]
    %v2472 = vld [vmem:[#allocation8 + $0x98] sm:$0xff]
    %v2473 = vld [vmem:[#allocation8 + $0xa0] sm:$0xff]
    %v2474 = vld [vmem:[#allocation8 + $0xa8] sm:$0xff]
    %v2475 = vld [vmem:[#allocation8 + $0xb0] sm:$0xff]
    %v2476 = vld [vmem:[#allocation8 + $0xb8] sm:$0xff]
    %v2477 = vld [vmem:[#allocation8 + $0xc0] sm:$0xff]
    %v2478 = vld [vmem:[#allocation8 + $0xc8] sm:$0xff]
    %v2479 = vld [vmem:[#allocation8 + $0xd0] sm:$0xff]
    %v2480 = vld [vmem:[#allocation8 + $0xd8] sm:$0xff]
    %v2481 = vld [vmem:[#allocation8 + $0xe0] sm:$0xff]
    %v2482 = vld [vmem:[#allocation8 + $0xe8] sm:$0xff]
    %v2483 = vld [vmem:[#allocation8 + $0xf0] sm:$0xff]
    %v2484 = vld [vmem:[#allocation8 + $0xf8] sm:$0xff]
    %v2517 = vunpack.c.l.b16 %v2453
    %v2518 = vunpack.c.h.b16 %v2453
    %v2519 = vunpack.c.l.b16 %v2454
    %v2520 = vunpack.c.h.b16 %v2454
    %v2521 = vunpack.c.l.b16 %v2455
    %v2522 = vunpack.c.h.b16 %v2455
    %v2523 = vunpack.c.l.b16 %v2456
    %v2524 = vunpack.c.h.b16 %v2456
    %v2525 = vunpack.c.l.b16 %v2457
    %v2526 = vunpack.c.h.b16 %v2457
    %v2527 = vunpack.c.l.b16 %v2458
    %v2528 = vunpack.c.h.b16 %v2458
    %v2529 = vunpack.c.l.b16 %v2459
    %v2530 = vunpack.c.h.b16 %v2459
    %v2531 = vunpack.c.l.b16 %v2460
    %v2532 = vunpack.c.h.b16 %v2460
    %v2533 = vunpack.c.l.b16 %v2461
    %v2534 = vunpack.c.h.b16 %v2461
    %v2535 = vunpack.c.l.b16 %v2462
    %v2536 = vunpack.c.h.b16 %v2462
    %v2537 = vunpack.c.l.b16 %v2463
    %v2538 = vunpack.c.h.b16 %v2463
    %v2539 = vunpack.c.l.b16 %v2464
    %v2540 = vunpack.c.h.b16 %v2464
    %v2541 = vunpack.c.l.b16 %v2465
    %v2542 = vunpack.c.h.b16 %v2465
    %v2543 = vunpack.c.l.b16 %v2466
    %v2544 = vunpack.c.h.b16 %v2466
    %v2545 = vunpack.c.l.b16 %v2467
    %v2546 = vunpack.c.h.b16 %v2467
    %v2547 = vunpack.c.l.b16 %v2468
    %v2548 = vunpack.c.h.b16 %v2468
    %v2549 = vunpack.c.l.b16 %v2469
    %v2550 = vunpack.c.h.b16 %v2469
    %v2551 = vunpack.c.l.b16 %v2470
    %v2552 = vunpack.c.h.b16 %v2470
    %v2553 = vunpack.c.l.b16 %v2471
    %v2554 = vunpack.c.h.b16 %v2471
    %v2555 = vunpack.c.l.b16 %v2472
    %v2556 = vunpack.c.h.b16 %v2472
    %v2557 = vunpack.c.l.b16 %v2473
    %v2558 = vunpack.c.h.b16 %v2473
    %v2559 = vunpack.c.l.b16 %v2474
    %v2560 = vunpack.c.h.b16 %v2474
    %v2561 = vunpack.c.l.b16 %v2475
    %v2562 = vunpack.c.h.b16 %v2475
    %v2563 = vunpack.c.l.b16 %v2476
    %v2564 = vunpack.c.h.b16 %v2476
    %v2565 = vunpack.c.l.b16 %v2477
    %v2566 = vunpack.c.h.b16 %v2477
    %v2567 = vunpack.c.l.b16 %v2478
    %v2568 = vunpack.c.h.b16 %v2478
    %v2569 = vunpack.c.l.b16 %v2479
    %v2570 = vunpack.c.h.b16 %v2479
    %v2571 = vunpack.c.l.b16 %v2480
    %v2572 = vunpack.c.h.b16 %v2480
    %v2573 = vunpack.c.l.b16 %v2481
    %v2574 = vunpack.c.h.b16 %v2481
    %v2575 = vunpack.c.l.b16 %v2482
    %v2576 = vunpack.c.h.b16 %v2482
    %v2577 = vunpack.c.l.b16 %v2483
    %v2578 = vunpack.c.h.b16 %v2483
    %v2579 = vunpack.c.l.b16 %v2484
    %v2580 = vunpack.c.h.b16 %v2484
    %v2581 = vpack.c.b16 %v2519, %v2517
    %v2582 = vpack.c.b16 %v2520, %v2518
    %v2583 = vpack.c.b16 %v2523, %v2521
    %v2584 = vpack.c.b16 %v2524, %v2522
    %v2585 = vpack.c.b16 %v2527, %v2525
    %v2586 = vpack.c.b16 %v2528, %v2526
    %v2587 = vpack.c.b16 %v2531, %v2529
    %v2588 = vpack.c.b16 %v2532, %v2530
    %v2589 = vpack.c.b16 %v2535, %v2533
    %v2590 = vpack.c.b16 %v2536, %v2534
    %v2591 = vpack.c.b16 %v2539, %v2537
    %v2592 = vpack.c.b16 %v2540, %v2538
    %v2593 = vpack.c.b16 %v2543, %v2541
    %v2594 = vpack.c.b16 %v2544, %v2542
    %v2595 = vpack.c.b16 %v2547, %v2545
    %v2596 = vpack.c.b16 %v2548, %v2546
    %v2597 = vpack.c.b16 %v2551, %v2549
    %v2598 = vpack.c.b16 %v2552, %v2550
    %v2599 = vpack.c.b16 %v2555, %v2553
    %v2600 = vpack.c.b16 %v2556, %v2554
    %v2601 = vpack.c.b16 %v2559, %v2557
    %v2602 = vpack.c.b16 %v2560, %v2558
    %v2603 = vpack.c.b16 %v2563, %v2561
    %v2604 = vpack.c.b16 %v2564, %v2562
    %v2605 = vpack.c.b16 %v2567, %v2565
    %v2606 = vpack.c.b16 %v2568, %v2566
    %v2607 = vpack.c.b16 %v2571, %v2569
    %v2608 = vpack.c.b16 %v2572, %v2570
    %v2609 = vpack.c.b16 %v2575, %v2573
    %v2610 = vpack.c.b16 %v2576, %v2574
    %v2611 = vpack.c.b16 %v2579, %v2577
    %v2612 = vpack.c.b16 %v2580, %v2578
    %2645 = vmatprep.subr.bf16.mxu0 %v2582
    %2646 = vmatpush1.bf16.msra.mxu0 %v2581
    %2647 = vmatprep.subr.bf16.mxu0 %v2584
    %2648 = vmatpush1.bf16.msra.mxu0 %v2583
    %2649 = vmatprep.subr.bf16.mxu0 %v2586
    %2650 = vmatpush1.bf16.msra.mxu0 %v2585
    %2651 = vmatprep.subr.bf16.mxu0 %v2588
    %2652 = vmatpush1.bf16.msra.mxu0 %v2587
    %2653 = vmatprep.subr.bf16.mxu0 %v2590
    %2654 = vmatpush1.bf16.msra.mxu0 %v2589
    %2655 = vmatprep.subr.bf16.mxu0 %v2592
    %2656 = vmatpush1.bf16.msra.mxu0 %v2591
    %2657 = vmatprep.subr.bf16.mxu0 %v2594
    %2658 = vmatpush1.bf16.msra.mxu0 %v2593
    %2659 = vmatprep.subr.bf16.mxu0 %v2596
    %2660 = vmatpush1.bf16.msra.mxu0 %v2595
    %2661 = vmatprep.subr.bf16.mxu0 %v2598
    %2662 = vmatpush1.bf16.msra.mxu0 %v2597
    %2663 = vmatprep.subr.bf16.mxu0 %v2600
    %2664 = vmatpush1.bf16.msra.mxu0 %v2599
    %2665 = vmatprep.subr.bf16.mxu0 %v2602
    %2666 = vmatpush1.bf16.msra.mxu0 %v2601
    %2667 = vmatprep.subr.bf16.mxu0 %v2604
    %2668 = vmatpush1.bf16.msra.mxu0 %v2603
    %2669 = vmatprep.subr.bf16.mxu0 %v2606
    %2670 = vmatpush1.bf16.msra.mxu0 %v2605
    %2671 = vmatprep.subr.bf16.mxu0 %v2608
    %2672 = vmatpush1.bf16.msra.mxu0 %v2607
    %2673 = vmatprep.subr.bf16.mxu0 %v2610
    %2674 = vmatpush1.bf16.msra.mxu0 %v2609
    %2675 = vmatprep.subr.bf16.mxu0 %v2612
    %2676 = vmatpush1.bf16.msra.mxu0 %v2611
    %2677 = vmatprep.mubr.bf16.mxu0 %v2452
    %2678 = vmatmul.mubr.bf16.gmra.mrb[0].mxu0 %v2451
    %v2679 = vpop.f32.mrb[0].mxu0
    %v2680 = vadd.f32 0.0, %v2679
    %v2681 = vpop.f32.mrb[0].mxu0
    %v2682 = vadd.f32 0.0, %v2681
    %v2683 = vpop.f32.mrb[0].mxu0
    %v2684 = vadd.f32 0.0, %v2683
    %v2685 = vpop.f32.mrb[0].mxu0
    %v2686 = vadd.f32 0.0, %v2685
    %2687 = vdwg.mxu0
    %v2688 = vpack.c.bf16 %v2684, %v2680
    %v2689 = vpack.c.bf16 %v2686, %v2682
    %v2690 = vld [vmem:[%s6] sm:$0x3]
    %v2693 = vunpack.c.l.s4 1966171168
    %v2694 = vunpack.c.0.s8 %v2693
    %v2695 = vlaneseq
    %v2696 = vshrl.u32 %v2695, 7
    %v2697 = vsub.s32 %v2694, %v2696
    %v2698 = vrot.slane %v2690, %v2697
    %v2699 = vcombine.high %v2698, %v2698
    %v2701 = vunpack.c.l.s4 1966171168
    %v2702 = vunpack.c.0.s8 %v2701
    %v2703 = vlaneseq
    %v2704 = vshrl.u32 %v2703, 7
    %v2705 = vsub.s32 %v2702, %v2704
    %v2706 = vrot.slane %v2698, %v2705
    %v2708 = vunpack.c.l.s4 1966171168
    %v2709 = vunpack.c.0.s8 %v2708
    %v2710 = vlaneseq
    %v2711 = vshrl.u32 %v2710, 7
    %v2712 = vsub.s32 %v2709, %v2711
    %v2713 = vrot.slane %v2699, %v2712
    %v2715 = vpack.i.b16 %v2706, %v2706
    %v2717 = vlaneseq
    %v2718 = vshrl.u32 %v2717, 7
    %v2719 = vsub.s32 0, %v2718
    %v2720 = vrot.slane %v2715, %v2719
    %v2722 = vpack.i.b16 %v2713, %v2713
    %v2724 = vlaneseq
    %v2725 = vshrl.u32 %v2724, 7
    %v2726 = vsub.s32 0, %v2725
    %v2727 = vrot.slane %v2722, %v2726
    %v2728 = vadd.bf16 %v2688, %v2720
    %v2729 = vadd.bf16 %v2689, %v2727
    %v2730 = vmax.bf16 %v2728, 0
    %v2731 = vmax.bf16 %v2729, 0
    %v2732 = vld [vmem:[#allocation10] sm:$0xff]
    %v2733 = vld [vmem:[#allocation10 + $0x8] sm:$0xff]
    %v2734 = vld [vmem:[#allocation10 + $0x10] sm:$0xff]
    %v2735 = vld [vmem:[#allocation10 + $0x18] sm:$0xff]
    %v2736 = vld [vmem:[#allocation10 + $0x20] sm:$0xff]
    %v2737 = vld [vmem:[#allocation10 + $0x28] sm:$0xff]
    %v2738 = vld [vmem:[#allocation10 + $0x30] sm:$0xff]
    %v2739 = vld [vmem:[#allocation10 + $0x38] sm:$0xff]
    %v2740 = vld [vmem:[#allocation10 + $0x40] sm:$0xff]
    %v2741 = vld [vmem:[#allocation10 + $0x48] sm:$0xff]
    %v2742 = vld [vmem:[#allocation10 + $0x50] sm:$0xff]
    %v2743 = vld [vmem:[#allocation10 + $0x58] sm:$0xff]
    %v2744 = vld [vmem:[#allocation10 + $0x60] sm:$0xff]
    %v2745 = vld [vmem:[#allocation10 + $0x68] sm:$0xff]
    %v2746 = vld [vmem:[#allocation10 + $0x70] sm:$0xff]
    %v2747 = vld [vmem:[#allocation10 + $0x78] sm:$0xff]
    %v2748 = vld [vmem:[#allocation10 + $0x80] sm:$0xff]
    %v2749 = vld [vmem:[#allocation10 + $0x88] sm:$0xff]
    %v2750 = vld [vmem:[#allocation10 + $0x90] sm:$0xff]
    %v2751 = vld [vmem:[#allocation10 + $0x98] sm:$0xff]
    %v2752 = vld [vmem:[#allocation10 + $0xa0] sm:$0xff]
    %v2753 = vld [vmem:[#allocation10 + $0xa8] sm:$0xff]
    %v2754 = vld [vmem:[#allocation10 + $0xb0] sm:$0xff]
    %v2755 = vld [vmem:[#allocation10 + $0xb8] sm:$0xff]
    %v2756 = vld [vmem:[#allocation10 + $0xc0] sm:$0xff]
    %v2757 = vld [vmem:[#allocation10 + $0xc8] sm:$0xff]
    %v2758 = vld [vmem:[#allocation10 + $0xd0] sm:$0xff]
    %v2759 = vld [vmem:[#allocation10 + $0xd8] sm:$0xff]
    %v2760 = vld [vmem:[#allocation10 + $0xe0] sm:$0xff]
    %v2761 = vld [vmem:[#allocation10 + $0xe8] sm:$0xff]
    %v2762 = vld [vmem:[#allocation10 + $0xf0] sm:$0xff]
    %v2763 = vld [vmem:[#allocation10 + $0xf8] sm:$0xff]
    %v2796 = vunpack.c.l.b16 %v2732
    %v2797 = vunpack.c.h.b16 %v2732
    %v2798 = vunpack.c.l.b16 %v2733
    %v2799 = vunpack.c.h.b16 %v2733
    %v2800 = vunpack.c.l.b16 %v2734
    %v2801 = vunpack.c.h.b16 %v2734
    %v2802 = vunpack.c.l.b16 %v2735
    %v2803 = vunpack.c.h.b16 %v2735
    %v2804 = vunpack.c.l.b16 %v2736
    %v2805 = vunpack.c.h.b16 %v2736
    %v2806 = vunpack.c.l.b16 %v2737
    %v2807 = vunpack.c.h.b16 %v2737
    %v2808 = vunpack.c.l.b16 %v2738
    %v2809 = vunpack.c.h.b16 %v2738
    %v2810 = vunpack.c.l.b16 %v2739
    %v2811 = vunpack.c.h.b16 %v2739
    %v2812 = vunpack.c.l.b16 %v2740
    %v2813 = vunpack.c.h.b16 %v2740
    %v2814 = vunpack.c.l.b16 %v2741
    %v2815 = vunpack.c.h.b16 %v2741
    %v2816 = vunpack.c.l.b16 %v2742
    %v2817 = vunpack.c.h.b16 %v2742
    %v2818 = vunpack.c.l.b16 %v2743
    %v2819 = vunpack.c.h.b16 %v2743
    %v2820 = vunpack.c.l.b16 %v2744
    %v2821 = vunpack.c.h.b16 %v2744
    %v2822 = vunpack.c.l.b16 %v2745
    %v2823 = vunpack.c.h.b16 %v2745
    %v2824 = vunpack.c.l.b16 %v2746
    %v2825 = vunpack.c.h.b16 %v2746
    %v2826 = vunpack.c.l.b16 %v2747
    %v2827 = vunpack.c.h.b16 %v2747
    %v2828 = vunpack.c.l.b16 %v2748
    %v2829 = vunpack.c.h.b16 %v2748
    %v2830 = vunpack.c.l.b16 %v2749
    %v2831 = vunpack.c.h.b16 %v2749
    %v2832 = vunpack.c.l.b16 %v2750
    %v2833 = vunpack.c.h.b16 %v2750
    %v2834 = vunpack.c.l.b16 %v2751
    %v2835 = vunpack.c.h.b16 %v2751
    %v2836 = vunpack.c.l.b16 %v2752
    %v2837 = vunpack.c.h.b16 %v2752
    %v2838 = vunpack.c.l.b16 %v2753
    %v2839 = vunpack.c.h.b16 %v2753
    %v2840 = vunpack.c.l.b16 %v2754
    %v2841 = vunpack.c.h.b16 %v2754
    %v2842 = vunpack.c.l.b16 %v2755
    %v2843 = vunpack.c.h.b16 %v2755
    %v2844 = vunpack.c.l.b16 %v2756
    %v2845 = vunpack.c.h.b16 %v2756
    %v2846 = vunpack.c.l.b16 %v2757
    %v2847 = vunpack.c.h.b16 %v2757
    %v2848 = vunpack.c.l.b16 %v2758
    %v2849 = vunpack.c.h.b16 %v2758
    %v2850 = vunpack.c.l.b16 %v2759
    %v2851 = vunpack.c.h.b16 %v2759
    %v2852 = vunpack.c.l.b16 %v2760
    %v2853 = vunpack.c.h.b16 %v2760
    %v2854 = vunpack.c.l.b16 %v2761
    %v2855 = vunpack.c.h.b16 %v2761
    %v2856 = vunpack.c.l.b16 %v2762
    %v2857 = vunpack.c.h.b16 %v2762
    %v2858 = vunpack.c.l.b16 %v2763
    %v2859 = vunpack.c.h.b16 %v2763
    %v2860 = vpack.c.b16 %v2798, %v2796
    %v2861 = vpack.c.b16 %v2799, %v2797
    %v2862 = vpack.c.b16 %v2802, %v2800
    %v2863 = vpack.c.b16 %v2803, %v2801
    %v2864 = vpack.c.b16 %v2806, %v2804
    %v2865 = vpack.c.b16 %v2807, %v2805
    %v2866 = vpack.c.b16 %v2810, %v2808
    %v2867 = vpack.c.b16 %v2811, %v2809
    %v2868 = vpack.c.b16 %v2814, %v2812
    %v2869 = vpack.c.b16 %v2815, %v2813
    %v2870 = vpack.c.b16 %v2818, %v2816
    %v2871 = vpack.c.b16 %v2819, %v2817
    %v2872 = vpack.c.b16 %v2822, %v2820
    %v2873 = vpack.c.b16 %v2823, %v2821
    %v2874 = vpack.c.b16 %v2826, %v2824
    %v2875 = vpack.c.b16 %v2827, %v2825
    %v2876 = vpack.c.b16 %v2830, %v2828
    %v2877 = vpack.c.b16 %v2831, %v2829
    %v2878 = vpack.c.b16 %v2834, %v2832
    %v2879 = vpack.c.b16 %v2835, %v2833
    %v2880 = vpack.c.b16 %v2838, %v2836
    %v2881 = vpack.c.b16 %v2839, %v2837
    %v2882 = vpack.c.b16 %v2842, %v2840
    %v2883 = vpack.c.b16 %v2843, %v2841
    %v2884 = vpack.c.b16 %v2846, %v2844
    %v2885 = vpack.c.b16 %v2847, %v2845
    %v2886 = vpack.c.b16 %v2850, %v2848
    %v2887 = vpack.c.b16 %v2851, %v2849
    %v2888 = vpack.c.b16 %v2854, %v2852
    %v2889 = vpack.c.b16 %v2855, %v2853
    %v2890 = vpack.c.b16 %v2858, %v2856
    %v2891 = vpack.c.b16 %v2859, %v2857
    %2924 = vmatprep.subr.bf16.mxu0 %v2861
    %2925 = vmatpush1.bf16.msra.mxu0 %v2860
    %2926 = vmatprep.subr.bf16.mxu0 %v2863
    %2927 = vmatpush1.bf16.msra.mxu0 %v2862
    %2928 = vmatprep.subr.bf16.mxu0 %v2865
    %2929 = vmatpush1.bf16.msra.mxu0 %v2864
    %2930 = vmatprep.subr.bf16.mxu0 %v2867
    %2931 = vmatpush1.bf16.msra.mxu0 %v2866
    %2932 = vmatprep.subr.bf16.mxu0 %v2869
    %2933 = vmatpush1.bf16.msra.mxu0 %v2868
    %2934 = vmatprep.subr.bf16.mxu0 %v2871
    %2935 = vmatpush1.bf16.msra.mxu0 %v2870
    %2936 = vmatprep.subr.bf16.mxu0 %v2873
    %2937 = vmatpush1.bf16.msra.mxu0 %v2872
    %2938 = vmatprep.subr.bf16.mxu0 %v2875
    %2939 = vmatpush1.bf16.msra.mxu0 %v2874
    %2940 = vmatprep.subr.bf16.mxu0 %v2877
    %2941 = vmatpush1.bf16.msra.mxu0 %v2876
    %2942 = vmatprep.subr.bf16.mxu0 %v2879
    %2943 = vmatpush1.bf16.msra.mxu0 %v2878
    %2944 = vmatprep.subr.bf16.mxu0 %v2881
    %2945 = vmatpush1.bf16.msra.mxu0 %v2880
    %2946 = vmatprep.subr.bf16.mxu0 %v2883
    %2947 = vmatpush1.bf16.msra.mxu0 %v2882
    %2948 = vmatprep.subr.bf16.mxu0 %v2885
    %2949 = vmatpush1.bf16.msra.mxu0 %v2884
    %2950 = vmatprep.subr.bf16.mxu0 %v2887
    %2951 = vmatpush1.bf16.msra.mxu0 %v2886
    %2952 = vmatprep.subr.bf16.mxu0 %v2889
    %2953 = vmatpush1.bf16.msra.mxu0 %v2888
    %2954 = vmatprep.subr.bf16.mxu0 %v2891
    %2955 = vmatpush1.bf16.msra.mxu0 %v2890
    %2956 = vmatprep.mubr.bf16.mxu0 %v2731
    %2957 = vmatmul.mubr.bf16.gmra.mrb[0].mxu0 %v2730
    %v2958 = vpop.f32.mrb[0].mxu0
    %v2959 = vadd.f32 0.0, %v2958
    %v2960 = vpop.f32.mrb[0].mxu0
    %v2961 = vadd.f32 0.0, %v2960
    %v2962 = vpop.f32.mrb[0].mxu0
    %v2963 = vadd.f32 0.0, %v2962
    %v2964 = vpop.f32.mrb[0].mxu0
    %v2965 = vadd.f32 0.0, %v2964
    %2966 = vdwg.mxu0
    %v2967 = vpack.c.bf16 %v2963, %v2959
    %v2968 = vpack.c.bf16 %v2965, %v2961
    %v2969 = vld [vmem:[%s8] sm:$0x3]
    %v2972 = vunpack.c.l.s4 1966171168
    %v2973 = vunpack.c.0.s8 %v2972
    %v2974 = vlaneseq
    %v2975 = vshrl.u32 %v2974, 7
    %v2976 = vsub.s32 %v2973, %v2975
    %v2977 = vrot.slane %v2969, %v2976
    %v2978 = vcombine.high %v2977, %v2977
    %v2980 = vunpack.c.l.s4 1966171168
    %v2981 = vunpack.c.0.s8 %v2980
    %v2982 = vlaneseq
    %v2983 = vshrl.u32 %v2982, 7
    %v2984 = vsub.s32 %v2981, %v2983
    %v2985 = vrot.slane %v2977, %v2984
    %v2987 = vunpack.c.l.s4 1966171168
    %v2988 = vunpack.c.0.s8 %v2987
    %v2989 = vlaneseq
    %v2990 = vshrl.u32 %v2989, 7
    %v2991 = vsub.s32 %v2988, %v2990
    %v2992 = vrot.slane %v2978, %v2991
    %v2994 = vpack.i.b16 %v2985, %v2985
    %v2996 = vlaneseq
    %v2997 = vshrl.u32 %v2996, 7
    %v2998 = vsub.s32 0, %v2997
    %v2999 = vrot.slane %v2994, %v2998
    %v3001 = vpack.i.b16 %v2992, %v2992
    %v3003 = vlaneseq
    %v3004 = vshrl.u32 %v3003, 7
    %v3005 = vsub.s32 0, %v3004
    %v3006 = vrot.slane %v3001, %v3005
    %v3007 = vadd.bf16 %v2967, %v2999
    %v3008 = vadd.bf16 %v2968, %v3006
    %v3009 = vmax.bf16 %v3007, 0
    %v3010 = vmax.bf16 %v3008, 0
    %v3011 = vld [vmem:[#allocation11] sm:$0xf]
    %v3012 = vld [vmem:[#allocation11 + $0x4] sm:$0xf]
    %v3013 = vld [vmem:[#allocation11 + $0x8] sm:$0xf]
    %v3014 = vld [vmem:[#allocation11 + $0xc] sm:$0xf]
    %v3015 = vld [vmem:[#allocation11 + $0x10] sm:$0xf]
    %v3016 = vld [vmem:[#allocation11 + $0x14] sm:$0xf]
    %v3017 = vld [vmem:[#allocation11 + $0x18] sm:$0xf]
    %v3018 = vld [vmem:[#allocation11 + $0x1c] sm:$0xf]
    %v3019 = vld [vmem:[#allocation11 + $0x20] sm:$0xf]
    %v3020 = vld [vmem:[#allocation11 + $0x24] sm:$0xf]
    %v3021 = vld [vmem:[#allocation11 + $0x28] sm:$0xf]
    %v3022 = vld [vmem:[#allocation11 + $0x2c] sm:$0xf]
    %v3023 = vld [vmem:[#allocation11 + $0x30] sm:$0xf]
    %v3024 = vld [vmem:[#allocation11 + $0x34] sm:$0xf]
    %v3025 = vld [vmem:[#allocation11 + $0x38] sm:$0xf]
    %v3026 = vld [vmem:[#allocation11 + $0x3c] sm:$0xf]
    %v3027 = vld [vmem:[#allocation11 + $0x40] sm:$0xf]
    %v3028 = vld [vmem:[#allocation11 + $0x44] sm:$0xf]
    %v3029 = vld [vmem:[#allocation11 + $0x48] sm:$0xf]
    %v3030 = vld [vmem:[#allocation11 + $0x4c] sm:$0xf]
    %v3031 = vld [vmem:[#allocation11 + $0x50] sm:$0xf]
    %v3032 = vld [vmem:[#allocation11 + $0x54] sm:$0xf]
    %v3033 = vld [vmem:[#allocation11 + $0x58] sm:$0xf]
    %v3034 = vld [vmem:[#allocation11 + $0x5c] sm:$0xf]
    %v3035 = vld [vmem:[#allocation11 + $0x60] sm:$0xf]
    %v3036 = vld [vmem:[#allocation11 + $0x64] sm:$0xf]
    %v3037 = vld [vmem:[#allocation11 + $0x68] sm:$0xf]
    %v3038 = vld [vmem:[#allocation11 + $0x6c] sm:$0xf]
    %v3039 = vld [vmem:[#allocation11 + $0x70] sm:$0xf]
    %v3040 = vld [vmem:[#allocation11 + $0x74] sm:$0xf]
    %v3041 = vld [vmem:[#allocation11 + $0x78] sm:$0xf]
    %v3042 = vld [vmem:[#allocation11 + $0x7c] sm:$0xf]
    %v3075 = vunpack.c.l.b16 %v3011
    %v3076 = vunpack.c.l.b16 %v3012
    %v3077 = vunpack.c.l.b16 %v3013
    %v3078 = vunpack.c.l.b16 %v3014
    %v3079 = vunpack.c.l.b16 %v3015
    %v3080 = vunpack.c.l.b16 %v3016
    %v3081 = vunpack.c.l.b16 %v3017
    %v3082 = vunpack.c.l.b16 %v3018
    %v3083 = vunpack.c.l.b16 %v3019
    %v3084 = vunpack.c.l.b16 %v3020
    %v3085 = vunpack.c.l.b16 %v3021
    %v3086 = vunpack.c.l.b16 %v3022
    %v3087 = vunpack.c.l.b16 %v3023
    %v3088 = vunpack.c.l.b16 %v3024
    %v3089 = vunpack.c.l.b16 %v3025
    %v3090 = vunpack.c.l.b16 %v3026
    %v3091 = vunpack.c.l.b16 %v3027
    %v3092 = vunpack.c.l.b16 %v3028
    %v3093 = vunpack.c.l.b16 %v3029
    %v3094 = vunpack.c.l.b16 %v3030
    %v3095 = vunpack.c.l.b16 %v3031
    %v3096 = vunpack.c.l.b16 %v3032
    %v3097 = vunpack.c.l.b16 %v3033
    %v3098 = vunpack.c.l.b16 %v3034
    %v3099 = vunpack.c.l.b16 %v3035
    %v3100 = vunpack.c.l.b16 %v3036
    %v3101 = vunpack.c.l.b16 %v3037
    %v3102 = vunpack.c.l.b16 %v3038
    %v3103 = vunpack.c.l.b16 %v3039
    %v3104 = vunpack.c.l.b16 %v3040
    %v3105 = vunpack.c.l.b16 %v3041
    %v3106 = vunpack.c.l.b16 %v3042
    %v3107 = vpack.c.b16 %v3076, %v3075
    %v3108 = vpack.c.b16 %v3078, %v3077
    %v3109 = vpack.c.b16 %v3080, %v3079
    %v3110 = vpack.c.b16 %v3082, %v3081
    %v3111 = vpack.c.b16 %v3084, %v3083
    %v3112 = vpack.c.b16 %v3086, %v3085
    %v3113 = vpack.c.b16 %v3088, %v3087
    %v3114 = vpack.c.b16 %v3090, %v3089
    %v3115 = vpack.c.b16 %v3092, %v3091
    %v3116 = vpack.c.b16 %v3094, %v3093
    %v3117 = vpack.c.b16 %v3096, %v3095
    %v3118 = vpack.c.b16 %v3098, %v3097
    %v3119 = vpack.c.b16 %v3100, %v3099
    %v3120 = vpack.c.b16 %v3102, %v3101
    %v3121 = vpack.c.b16 %v3104, %v3103
    %v3122 = vpack.c.b16 %v3106, %v3105
    %3139 = vmatprep.subr.bf16.mxu0 0
    %3140 = vmatpush1.bf16.msra.mxu0 %v3107
    %3141 = vmatprep.subr.bf16.mxu0 0
    %3142 = vmatpush1.bf16.msra.mxu0 %v3108
    %3143 = vmatprep.subr.bf16.mxu0 0
    %3144 = vmatpush1.bf16.msra.mxu0 %v3109
    %3145 = vmatprep.subr.bf16.mxu0 0
    %3146 = vmatpush1.bf16.msra.mxu0 %v3110
    %3147 = vmatprep.subr.bf16.mxu0 0
    %3148 = vmatpush1.bf16.msra.mxu0 %v3111
    %3149 = vmatprep.subr.bf16.mxu0 0
    %3150 = vmatpush1.bf16.msra.mxu0 %v3112
    %3151 = vmatprep.subr.bf16.mxu0 0
    %3152 = vmatpush1.bf16.msra.mxu0 %v3113
    %3153 = vmatprep.subr.bf16.mxu0 0
    %3154 = vmatpush1.bf16.msra.mxu0 %v3114
    %3155 = vmatprep.subr.bf16.mxu0 0
    %3156 = vmatpush1.bf16.msra.mxu0 %v3115
    %3157 = vmatprep.subr.bf16.mxu0 0
    %3158 = vmatpush1.bf16.msra.mxu0 %v3116
    %3159 = vmatprep.subr.bf16.mxu0 0
    %3160 = vmatpush1.bf16.msra.mxu0 %v3117
    %3161 = vmatprep.subr.bf16.mxu0 0
    %3162 = vmatpush1.bf16.msra.mxu0 %v3118
    %3163 = vmatprep.subr.bf16.mxu0 0
    %3164 = vmatpush1.bf16.msra.mxu0 %v3119
    %3165 = vmatprep.subr.bf16.mxu0 0
    %3166 = vmatpush1.bf16.msra.mxu0 %v3120
    %3167 = vmatprep.subr.bf16.mxu0 0
    %3168 = vmatpush1.bf16.msra.mxu0 %v3121
    %3169 = vmatprep.subr.bf16.mxu0 0
    %3170 = vmatpush1.bf16.msra.mxu0 %v3122
    %3171 = vmatprep.mubr.bf16.mxu0 %v3010
    %3172 = vmatmul.mubr.bf16.gmra.mrb[0].mxu0 %v3009
    %v3173 = vpop.f32.mrb[0].mxu0
    %v3174 = vadd.f32 0.0, %v3173
    %v3175 = vpop.f32.mrb[0].mxu0
    %v3176 = vpop.f32.mrb[0].mxu0
    %v3177 = vadd.f32 0.0, %v3176
    %v3178 = vpop.f32.mrb[0].mxu0
    %3179 = vdwg.mxu0
    %v3180 = vpack.c.bf16 %v3177, %v3174
    %v3181 = vld [vmem:[%s10] sm:$0x1]
    %v3183 = vpack.i.b16 %v3181, %v3181
    %v3185 = vlaneseq
    %v3186 = vshrl.u32 %v3185, 7
    %v3187 = vsub.s32 0, %v3186
    %v3188 = vrot.slane %v3183, %v3187
    %v3189 = vadd.bf16 %v3180, %v3188
    %v3190 = vmax.bf16 %v3189, 0
    %v3191 = vld [vmem:[#allocation13] sm:$0xf]
    %v3192 = vld [vmem:[#allocation13 + $0x4] sm:$0xf]
    %v3193 = vld [vmem:[#allocation13 + $0x8] sm:$0xf]
    %v3194 = vld [vmem:[#allocation13 + $0xc] sm:$0xf]
    %v3195 = vld [vmem:[#allocation13 + $0x10] sm:$0xf]
    %v3196 = vld [vmem:[#allocation13 + $0x14] sm:$0xf]
    %v3197 = vld [vmem:[#allocation13 + $0x18] sm:$0xf]
    %v3198 = vld [vmem:[#allocation13 + $0x1c] sm:$0xf]
    %v3199 = vld [vmem:[#allocation13 + $0x20] sm:$0xf]
    %v3200 = vld [vmem:[#allocation13 + $0x24] sm:$0xf]
    %v3201 = vld [vmem:[#allocation13 + $0x28] sm:$0xf]
    %v3202 = vld [vmem:[#allocation13 + $0x2c] sm:$0xf]
    %v3203 = vld [vmem:[#allocation13 + $0x30] sm:$0xf]
    %v3204 = vld [vmem:[#allocation13 + $0x34] sm:$0xf]
    %v3205 = vld [vmem:[#allocation13 + $0x38] sm:$0xf]
    %v3206 = vld [vmem:[#allocation13 + $0x3c] sm:$0xf]
    %v3223 = vunpack.c.l.b16 %v3191
    %v3224 = vunpack.c.l.b16 %v3192
    %v3225 = vunpack.c.l.b16 %v3193
    %v3226 = vunpack.c.l.b16 %v3194
    %v3227 = vunpack.c.l.b16 %v3195
    %v3228 = vunpack.c.l.b16 %v3196
    %v3229 = vunpack.c.l.b16 %v3197
    %v3230 = vunpack.c.l.b16 %v3198
    %v3231 = vunpack.c.l.b16 %v3199
    %v3232 = vunpack.c.l.b16 %v3200
    %v3233 = vunpack.c.l.b16 %v3201
    %v3234 = vunpack.c.l.b16 %v3202
    %v3235 = vunpack.c.l.b16 %v3203
    %v3236 = vunpack.c.l.b16 %v3204
    %v3237 = vunpack.c.l.b16 %v3205
    %v3238 = vunpack.c.l.b16 %v3206
    %v3239 = vpack.c.b16 %v3224, %v3223
    %v3240 = vpack.c.b16 %v3226, %v3225
    %v3241 = vpack.c.b16 %v3228, %v3227
    %v3242 = vpack.c.b16 %v3230, %v3229
    %v3243 = vpack.c.b16 %v3232, %v3231
    %v3244 = vpack.c.b16 %v3234, %v3233
    %v3245 = vpack.c.b16 %v3236, %v3235
    %v3246 = vpack.c.b16 %v3238, %v3237
    %3255 = vmatprep.subr.bf16.mxu0 0
    %3256 = vmatpush1.bf16.msra.mxu0 %v3239
    %3257 = vmatprep.subr.bf16.mxu0 0
    %3258 = vmatpush1.bf16.msra.mxu0 %v3240
    %3259 = vmatprep.subr.bf16.mxu0 0
    %3260 = vmatpush1.bf16.msra.mxu0 %v3241
    %3261 = vmatprep.subr.bf16.mxu0 0
    %3262 = vmatpush1.bf16.msra.mxu0 %v3242
    %3263 = vmatprep.subr.bf16.mxu0 0
    %3264 = vmatpush1.bf16.msra.mxu0 %v3243
    %3265 = vmatprep.subr.bf16.mxu0 0
    %3266 = vmatpush1.bf16.msra.mxu0 %v3244
    %3267 = vmatprep.subr.bf16.mxu0 0
    %3268 = vmatpush1.bf16.msra.mxu0 %v3245
    %3269 = vmatprep.subr.bf16.mxu0 0
    %3270 = vmatpush1.bf16.msra.mxu0 %v3246
    %3271 = vmatprep.subr.bf16.mxu0 0
    %3272 = vmatpush1.bf16.msra.mxu0 0
    %3273 = vmatprep.subr.bf16.mxu0 0
    %3274 = vmatpush1.bf16.msra.mxu0 0
    %3275 = vmatprep.subr.bf16.mxu0 0
    %3276 = vmatpush1.bf16.msra.mxu0 0
    %3277 = vmatprep.subr.bf16.mxu0 0
    %3278 = vmatpush1.bf16.msra.mxu0 0
    %3279 = vmatprep.subr.bf16.mxu0 0
    %3280 = vmatpush1.bf16.msra.mxu0 0
    %3281 = vmatprep.subr.bf16.mxu0 0
    %3282 = vmatpush1.bf16.msra.mxu0 0
    %3283 = vmatprep.subr.bf16.mxu0 0
    %3284 = vmatpush1.bf16.msra.mxu0 0
    %3285 = vmatprep.subr.bf16.mxu0 0
    %3286 = vmatpush1.bf16.msra.mxu0 0
    %3287 = vmatprep.mubr.bf16.mxu0 0
    %3288 = vmatmul.mubr.bf16.gmra.mrb[0].mxu0 %v3190
    %v3289 = vpop.f32.mrb[0].mxu0
    %v3290 = vadd.f32 0.0, %v3289
    %v3291 = vpop.f32.mrb[0].mxu0
    %v3292 = vpop.f32.mrb[0].mxu0
    %v3293 = vadd.f32 0.0, %v3292
    %v3294 = vpop.f32.mrb[0].mxu0
    %3295 = vdwg.mxu0
    %v3296 = vpack.c.bf16 %v3293, %v3290
    %v3297 = vld [vmem:[%s12] sm:$0x1]
    %v3299 = vpack.i.b16 %v3297, %v3297
    %v3301 = vlaneseq
    %v3302 = vshrl.u32 %v3301, 7
    %v3303 = vsub.s32 0, %v3302
    %v3304 = vrot.slane %v3299, %v3303
    %v3305 = vadd.bf16 %v3296, %v3304
    %v3307 = vunpack.c.l.b16 %v3305
    %v3308 = vunpack.c.h.b16 %v3305
    %v3309 = vpack.c.b16 %v3307, %v3307
    %v3310 = vpack.c.b16 %v3308, %v3308
    %3313 = vst [vmem:[#allocation14] sm:$0xf] %v3309
    %3314 = vst [vmem:[#allocation14 + $0x4] sm:$0xf] %v3310
    // Predicated region
    $region82: #{tpu_custom_call.1} parent=1 // pred_check
      _
    $region83: #{tpu_custom_call.1} parent=1 // pred_check_branch
      %3316 = sbr.rel (0) target = $region85
    $region84: #{tpu_custom_call.1} parent=1 // pred_region
      %s3318 = ssub.s32 128, 128
      %3319 = vsyncadd [#allocation4], %s3318
      %s3320 = sshll.u32 [#allocation14], 4
      %s3321 = int_to_ptr.vmem [resolvable:$true] %s3320
      %3326 = dma.vmem_to_hbm [thread:$0]  %s3321, 128, %s13, [#allocation4], 64, 64, 4
    $region85: #{tpu_custom_call.1} parent=1 // pred_fallthru
      _
    // Predicated region
    $region86: #{tpu_custom_call.1} parent=1 // pred_check
      _
    $region87: #{tpu_custom_call.1} parent=1 // pred_check_branch
      %3328 = sbr.rel (0) target = $region89
    $region88: #{tpu_custom_call.1} parent=1 // pred_region
      %3329 = dma.done [#allocation4], 128
    $region89: #{tpu_custom_call.1} parent=1 // pred_fallthru
      _
    %3330 = vsyncpa [#allocation3], 1
    %3331 = vsyncpa [#allocation6], 1
    %3332 = vsyncpa [#allocation9], 1
    %3333 = vsyncpa [#allocation12], 1
    %3334 = vsyncpa [#allocation4], 1

</llo_original>
